<compile_context>
chip_gen: v6e
topology: v6e:2x2x1
jax: 0.10.0
libtpu: 0.0.40
codegen_flags: <defaults>
</compile_context>

<pallas_src>
import jax
import jax.numpy as jnp
from jax import lax
from jax.experimental import pallas as pl
from jax.experimental.pallas import tpu as pltpu

# ---- config (deterministic, mirrors D3FeatLoss.__init__ fields) ----
LOG_SCALE = 10.0                  # circle_loss_log_scale
POS_OPTIMAL = 0.1                 # circle_loss_positive_optimal
NEG_OPTIMAL = 1.4                 # circle_loss_negative_optimal
POS_MARGIN = 0.1                  # circle_loss_positive_margin
NEG_MARGIN = 1.4                  # circle_loss_negative_margin
MAX_POINTS = 128                  # circle_loss_max_correspondence
POS_RADIUS = 0.0375 + 0.001       # loss_positive_radius + 0.001
NEG_RADIUS = 0.1                  # loss_negative_radius
POS_RADIUS_SQ = POS_RADIUS * POS_RADIUS   # squared thresholds (cd kept squared)
NEG_RADIUS_SQ = NEG_RADIUS * NEG_RADIUS
ALPHA_CIRCLE = 1.0                # alpha_circle_loss
ALPHA_DETECTION = 1.0             # alpha_detection_loss


def _softplus(x):
    # numerically stable softplus (small (N,1)/(1,N) vectors only)
    return jnp.maximum(x, 0.0) + jnp.log(1.0 + jnp.exp(-jnp.abs(x)))


def d3feat_loss_kernel(p0_ref, p1_ref, sa_ref, sbT_ref, ff0_ref, ff1_ref,
                       ssum_ref, out_ref):
    f32 = jnp.float32
    # contract last dims of both operands ("A @ B.T" without materializing B.T)
    dn = (((1,), (1,)), ((), ()))
    n = p0_ref.shape[0]

    # ---- squared pairwise coordinate distances ----
    # Cancellation-sensitive add done on the VPU in f32 (NOT folded into the
    # MXU accumulator): cd2 = |a|^2 + |b|^2 - 2 a.b
    ip = lax.dot_general(p0_ref[...], p1_ref[...], dn,
                         preferred_element_type=f32)                     # (N,N)
    cd2 = jnp.maximum(sa_ref[...] + sbT_ref[...] - 2.0 * ip, 0.0)        # (N,N)

    # has-pos / has-neg flags from min/max reduces (no bool->f32 cast+sum)
    row_has_pos = jnp.min(cd2, axis=-1, keepdims=True) < POS_RADIUS_SQ   # (N,1)
    row_has_neg = jnp.max(cd2, axis=-1, keepdims=True) > NEG_RADIUS_SQ   # (N,1)
    col_has_pos = jnp.min(cd2, axis=0, keepdims=True) < POS_RADIUS_SQ    # (1,N)
    col_has_neg = jnp.max(cd2, axis=0, keepdims=True) > NEG_RADIUS_SQ    # (1,N)

    # ---- squared pairwise feature distances (norms folded; benign) ----
    fd2 = jnp.maximum(
        lax.dot_general(ff0_ref[...], ff1_ref[...], dn,
                        preferred_element_type=f32), 0.0)                # (N,N)

    # ---- recall (no_grad branch), done on squared distances ----
    # NOTE: single-pass nn lookup (min of cd2 over fd2-argmin ties); differs
    # from torch.min first-index tie-breaking only under exact feature-distance
    # ties, which is measure-zero for float features.
    fd2_min = jnp.min(fd2, axis=-1, keepdims=True)                       # (N,1)
    nn_cd2 = jnp.min(jnp.where(fd2 == fd2_min, cd2, jnp.float32(jnp.inf)),
                     axis=-1, keepdims=True)                             # (N,1)
    num_gt_pos = jnp.sum(row_has_pos.astype(f32), axis=0,
                         keepdims=True) + 1e-12                          # (1,1)
    num_pred_pos = jnp.sum(
        jnp.where(row_has_pos & (nn_cd2 < POS_RADIUS_SQ), 1.0, 0.0),
        axis=0, keepdims=True)                                           # (1,1)
    recall = num_pred_pos / num_gt_pos                                   # (1,1)

    fd = jnp.sqrt(fd2)                                                   # (N,N)

    # ---- circle loss ----
    # Masked entries have weight 0 so they contribute exp(0)=1 to the
    # logsumexp; this matches the reference 1e5-masking exactly — do NOT
    # "fix" it to -inf masking.
    # No max-shift in the logsumexps: lp = 10*max(fd-0.1,0)^2 <= ~36 and
    # ln = 10*max(1.4-fd,0)^2 <= ~20 for L2-normalized features (fd <= 2), so
    # exp() stays far below f32 overflow.  Requires normalized features.
    pos_w = jnp.where(cd2 < POS_RADIUS_SQ,
                      jnp.maximum(fd - POS_OPTIMAL, 0.0), 0.0)
    lp = LOG_SCALE * (fd - POS_MARGIN) * pos_w
    ep = jnp.exp(lp)                                                     # one EUP pass
    lse_p_row = jnp.log(jnp.sum(ep, axis=-1, keepdims=True))             # (N,1)
    lse_p_col = jnp.log(jnp.sum(ep, axis=0, keepdims=True))              # (1,N)

    neg_w = jnp.where(cd2 > NEG_RADIUS_SQ,
                      jnp.maximum(NEG_OPTIMAL - fd, 0.0), 0.0)
    ln_ = LOG_SCALE * (NEG_MARGIN - fd) * neg_w
    en = jnp.exp(ln_)                                                    # one EUP pass
    lse_n_row = jnp.log(jnp.sum(en, axis=-1, keepdims=True))             # (N,1)
    lse_n_col = jnp.log(jnp.sum(en, axis=0, keepdims=True))              # (1,N)

    loss_row = _softplus(lse_p_row + lse_n_row) * (1.0 / LOG_SCALE)      # (N,1)
    loss_col = _softplus(lse_p_col + lse_n_col) * (1.0 / LOG_SCALE)      # (1,N)

    row_sel = row_has_pos & row_has_neg                                  # (N,1)
    col_sel = col_has_pos & col_has_neg                                  # (1,N)
    # count clamped to 1 -> circle_loss is 0 (not NaN) when no row/col is
    # selected; reference mean-of-empty would be NaN in that degenerate case.
    row_cnt = jnp.maximum(jnp.sum(row_sel.astype(f32), axis=0, keepdims=True), 1.0)
    col_cnt = jnp.maximum(jnp.sum(col_sel.astype(f32), axis=1, keepdims=True), 1.0)
    mean_row = jnp.sum(jnp.where(row_sel, loss_row, 0.0),
                       axis=0, keepdims=True) / row_cnt
    mean_col = jnp.sum(jnp.where(col_sel, loss_col, 0.0),
                       axis=1, keepdims=True) / col_cnt
    circle_loss = 0.5 * (mean_row + mean_col)                            # (1,1)

    # ---- detection loss (correspondence indices are arange -> identity mask) ----
    row_idx = lax.broadcasted_iota(jnp.int32, (n, n), 0)
    col_idx = lax.broadcasted_iota(jnp.int32, (n, n), 1)
    diag = row_idx == col_idx
    furthest_pos = jnp.max(jnp.where(diag, fd, 0.0),
                           axis=-1, keepdims=True)                       # (N,1)
    closest_neg = jnp.min(jnp.where(diag, jnp.float32(1e30), fd),
                          axis=-1, keepdims=True)                        # (N,1)
    det_vec = (furthest_pos - closest_neg) * ssum_ref[...]               # (N,1)
    detection_loss = jnp.sum(det_vec, axis=0,
                             keepdims=True) * (1.0 / float(n))           # (1,1)

    overall = ALPHA_CIRCLE * circle_loss + ALPHA_DETECTION * detection_loss

    # tiny (1,4) output tile: [recall, circle, detection, overall]
    lane = lax.broadcasted_iota(jnp.int32, (1, 4), 1)
    out_ref[...] = jnp.where(lane == 0, recall,
                   jnp.where(lane == 1, circle_loss,
                   jnp.where(lane == 2, detection_loss, overall)))


def _run_kernel(p0, p1, sa, sbT, ff0, ff1, ssum):
    """Batched pallas_call: leading (parallel) grid axis over correspondence sets."""
    B, N, _ = p0.shape
    Kf = ff0.shape[-1]

    def spec(shape):
        # squeeze the leading batch dim out of the kernel refs
        return pl.BlockSpec((None,) + shape,
                            lambda b, _s=shape: (b,) + (0,) * len(_s))

    return pl.pallas_call(
        d3feat_loss_kernel,
        out_shape=jax.ShapeDtypeStruct((B, 1, 4), jnp.float32),
        grid=(B,),
        in_specs=[spec((N, 8)),    # p0 (padded to 8 lanes)
                  spec((N, 8)),    # p1
                  spec((N, 1)),    # |p0|^2
                  spec((1, N)),    # |p1|^2 (row vector)
                  spec((N, Kf)),   # packed feats0
                  spec((N, Kf)),   # packed feats1
                  spec((N, 1))],   # scores0 + scores1
        out_specs=spec((1, 4)),
        compiler_params=pltpu.CompilerParams(
            dimension_semantics=("parallel",)),
    )(p0, p1, sa, sbT, ff0, ff1, ssum)


def apply_transform(points, transform):
    rot = transform[:3, :3]
    trans = transform[:3, 3]
    return points @ rot.T + trans


def _pack_sqdist(a, b, pad_to):
    """Fold squared norms into the operands so a' @ b'.T == ||a-b||^2 pairwise."""
    sa = jnp.sum(a * a, axis=-1, keepdims=True)
    sb = jnp.sum(b * b, axis=-1, keepdims=True)
    pa = jnp.concatenate([a, sa, jnp.ones_like(sa)], axis=-1)
    pb = jnp.concatenate([-2.0 * b, jnp.ones_like(sb), sb], axis=-1)
    pad = pad_to - pa.shape[1]
    if pad > 0:
        pa = jnp.pad(pa, ((0, 0), (0, pad)))
        pb = jnp.pad(pb, ((0, 0), (0, pad)))
    return pa, pb


@jax.jit
def d3feat_loss(points0, points1, feats0, feats1, scores0, scores1,
                correspondences, transform):
    # ---- glue (transform / subsample / gathers / packing) fused under jit ----
    points1 = apply_transform(points1, transform)
    if correspondences.shape[0] > MAX_POINTS:
        # TODO(synk): reference uses np.random.permutation (host RNG); we use a
        # deterministic jax.random permutation instead.
        perm = jax.random.permutation(jax.random.PRNGKey(0),
                                      correspondences.shape[0])[:MAX_POINTS]
        correspondences = correspondences[perm]
    idx0 = correspondences[:, 0]
    idx1 = correspondences[:, 1]
    p0 = points0[idx0].astype(jnp.float32)
    p1 = points1[idx1].astype(jnp.float32)
    f0 = feats0[idx0].astype(jnp.float32)
    f1 = feats1[idx1].astype(jnp.float32)
    ssum = (scores0[idx0] + scores1[idx1]).astype(jnp.float32).reshape(-1, 1)

    # points: raw (zero-padded) operands + separate squared norms, so the
    # cancellation-prone add runs on the VPU in f32 inside the kernel.
    p0p = jnp.pad(p0, ((0, 0), (0, 8 - p0.shape[1])))
    p1p = jnp.pad(p1, ((0, 0), (0, 8 - p1.shape[1])))
    sa = jnp.sum(p0 * p0, axis=-1, keepdims=True)                # (N,1)
    sbT = jnp.sum(p1 * p1, axis=-1, keepdims=True).T             # (1,N)

    # features: norms folded into the matmul (F+2 -> multiple of 8)
    ff0, ff1 = _pack_sqdist(f0, f1, 8 * pl.cdiv(f0.shape[1] + 2, 8))

    add_b = lambda x: x[None]                                    # B = 1 pair
    out = _run_kernel(add_b(p0p), add_b(p1p), add_b(sa), add_b(sbT),
                      add_b(ff0), add_b(ff1), add_b(ssum))
    return {
        "recall": out[0, 0, 0],
        "circle_loss": out[0, 0, 1],
        "detection_loss": out[0, 0, 2],
        "overall_loss": out[0, 0, 3],
    }


if __name__ == "__main__":
    key = jax.random.PRNGKey(0)
    k1, k2, k3, k4, k5 = jax.random.split(key, 5)
    M, N, F = 160, 128, 32

    # world-frame source points
    points0 = jax.random.uniform(k1, (M, 3), jnp.float32) * 2.0

    # deterministic rigid transform (rotation about z + translation)
    ang = 0.3
    c, s = jnp.cos(ang), jnp.sin(ang)
    rot = jnp.array([[c, -s, 0.0], [s, c, 0.0], [0.0, 0.0, 1.0]], jnp.float32)
    trans = jnp.array([0.5, -0.2, 0.1], jnp.float32)
    transform = jnp.eye(4, dtype=jnp.float32)
    transform = transform.at[:3, :3].set(rot).at[:3, 3].set(trans)

    # target points that land near points0 after apply_transform
    noise = 0.005 * jax.random.normal(k2, (M, 3), jnp.float32)
    points1 = (points0 + noise - trans) @ rot

    feats0 = jax.random.normal(k3, (M, F), jnp.float32)
    feats0 = feats0 / jnp.linalg.norm(feats0, axis=-1, keepdims=True)
    feats1 = feats0 + 0.05 * jax.random.normal(k4, (M, F), jnp.float32)
    feats1 = feats1 / jnp.linalg.norm(feats1, axis=-1, keepdims=True)

    scores0 = jax.random.uniform(k5, (M,), jnp.float32)
    scores1 = jax.random.uniform(jax.random.PRNGKey(1), (M,), jnp.float32)

    correspondences = jnp.stack(
        [jnp.arange(N, dtype=jnp.int32), jnp.arange(N, dtype=jnp.int32)], axis=1)

    result = d3feat_loss(points0, points1, feats0, feats1, scores0, scores1,
                         correspondences, transform)
    result = jax.block_until_ready(result)
    for name, val in result.items():
        assert bool(jnp.isfinite(val)), name
    print("KERNEL_OK")
</pallas_src>

<mosaic_0001>
module attributes {stable_mosaic.version = 11 : i64} {
  func.func @d3feat_loss_kernel(%arg0: i32, %arg1: memref<1x128x8xf32, #tpu.memory_space<vmem>>, %arg2: memref<1x128x8xf32, #tpu.memory_space<vmem>>, %arg3: memref<1x128x1xf32, #tpu.memory_space<vmem>>, %arg4: memref<1x1x128xf32, #tpu.memory_space<vmem>>, %arg5: memref<1x128x40xf32, #tpu.memory_space<vmem>>, %arg6: memref<1x128x40xf32, #tpu.memory_space<vmem>>, %arg7: memref<1x128x1xf32, #tpu.memory_space<vmem>>, %arg8: memref<1x1x4xf32, #tpu.memory_space<vmem>>) attributes {dimension_semantics = [#tpu.dimension_semantics<parallel>], iteration_bounds = array<i64: 1>, scalar_prefetch = 0 : i64, scratch_operands = 0 : i64, tpu.core_type = #tpu.core_type<tc>, window_params = [{transform_indices = @transform_0, window_bounds = array<i64: 1, 128, 8>}, {transform_indices = @transform_1, window_bounds = array<i64: 1, 128, 8>}, {transform_indices = @transform_2, window_bounds = array<i64: 1, 128, 1>}, {transform_indices = @transform_3, window_bounds = array<i64: 1, 1, 128>}, {transform_indices = @transform_4, window_bounds = array<i64: 1, 128, 40>}, {transform_indices = @transform_5, window_bounds = array<i64: 1, 128, 40>}, {transform_indices = @transform_6, window_bounds = array<i64: 1, 128, 1>}, {transform_indices = @transform_7, window_bounds = array<i64: 1, 1, 4>}]} {
    %c0 = arith.constant 0 : index
    %c0_0 = arith.constant 0 : index
    %c0_1 = arith.constant 0 : index
    %0 = vector.load %arg1[%c0, %c0_0, %c0_1] : memref<1x128x8xf32, #tpu.memory_space<vmem>>, vector<1x128x8xf32>
    %1 = vector.shape_cast %0 : vector<1x128x8xf32> to vector<128x8xf32>
    %c0_2 = arith.constant 0 : index
    %c0_3 = arith.constant 0 : index
    %c0_4 = arith.constant 0 : index
    %2 = vector.load %arg2[%c0_2, %c0_3, %c0_4] : memref<1x128x8xf32, #tpu.memory_space<vmem>>, vector<1x128x8xf32>
    %3 = vector.shape_cast %2 : vector<1x128x8xf32> to vector<128x8xf32>
    %cst = arith.constant dense<0.000000e+00> : vector<128x128xf32>
    %4 = tpu.matmul %1, %3, %cst {dimension_numbers = #tpu.dot_dimension_numbers<[1], [1], [0], [0], [0, 0, 1, 0], [], []>} : vector<128x8xf32>, vector<128x8xf32>, vector<128x128xf32> -> vector<128x128xf32>
    %c0_5 = arith.constant 0 : index
    %c0_6 = arith.constant 0 : index
    %c0_7 = arith.constant 0 : index
    %5 = vector.load %arg3[%c0_5, %c0_6, %c0_7] : memref<1x128x1xf32, #tpu.memory_space<vmem>>, vector<1x128x1xf32>
    %6 = vector.shape_cast %5 : vector<1x128x1xf32> to vector<128x1xf32>
    %c0_8 = arith.constant 0 : index
    %c0_9 = arith.constant 0 : index
    %c0_10 = arith.constant 0 : index
    %7 = vector.load %arg4[%c0_8, %c0_9, %c0_10] : memref<1x1x128xf32, #tpu.memory_space<vmem>>, vector<1x1x128xf32>
    %8 = vector.shape_cast %7 : vector<1x1x128xf32> to vector<1x128xf32>
    %9 = vector.broadcast %6 : vector<128x1xf32> to vector<128x128xf32>
    %10 = vector.broadcast %8 : vector<1x128xf32> to vector<128x128xf32>
    %11 = arith.addf %9, %10 : vector<128x128xf32>
    %cst_11 = arith.constant 2.000000e+00 : f32
    %12 = vector.broadcast %cst_11 : f32 to vector<128x128xf32>
    %13 = arith.mulf %12, %4 : vector<128x128xf32>
    %14 = arith.subf %11, %13 : vector<128x128xf32>
    %cst_12 = arith.constant 0.000000e+00 : f32
    %15 = vector.broadcast %cst_12 : f32 to vector<128x128xf32>
    %16 = arith.maximumf %14, %15 : vector<128x128xf32>
    %cst_13 = arith.constant dense<0x7F800000> : vector<128xf32>
    %17 = vector.multi_reduction <minimumf>, %16, %cst_13 [1] : vector<128x128xf32> to vector<128xf32>
    %18 = vector.shape_cast %17 : vector<128xf32> to vector<128x1xf32>
    %cst_14 = arith.constant 1.482250e-03 : f32
    %19 = vector.broadcast %cst_14 : f32 to vector<128x1xf32>
    %20 = arith.cmpf olt, %18, %19 : vector<128x1xf32>
    %cst_15 = arith.constant dense<0xFF800000> : vector<128xf32>
    %21 = vector.multi_reduction <maximumf>, %16, %cst_15 [1] : vector<128x128xf32> to vector<128xf32>
    %22 = vector.shape_cast %21 : vector<128xf32> to vector<128x1xf32>
    %cst_16 = arith.constant 0.00999999977 : f32
    %23 = vector.broadcast %cst_16 : f32 to vector<128x1xf32>
    %24 = arith.cmpf ogt, %22, %23 : vector<128x1xf32>
    %cst_17 = arith.constant dense<0x7F800000> : vector<128xf32>
    %25 = vector.multi_reduction <minimumf>, %16, %cst_17 [0] : vector<128x128xf32> to vector<128xf32>
    %26 = vector.shape_cast %25 : vector<128xf32> to vector<1x128xf32>
    %cst_18 = arith.constant 1.482250e-03 : f32
    %27 = vector.broadcast %cst_18 : f32 to vector<1x128xf32>
    %28 = arith.cmpf olt, %26, %27 : vector<1x128xf32>
    %cst_19 = arith.constant dense<0xFF800000> : vector<128xf32>
    %29 = vector.multi_reduction <maximumf>, %16, %cst_19 [0] : vector<128x128xf32> to vector<128xf32>
    %30 = vector.shape_cast %29 : vector<128xf32> to vector<1x128xf32>
    %cst_20 = arith.constant 0.00999999977 : f32
    %31 = vector.broadcast %cst_20 : f32 to vector<1x128xf32>
    %32 = arith.cmpf ogt, %30, %31 : vector<1x128xf32>
    %c0_21 = arith.constant 0 : index
    %c0_22 = arith.constant 0 : index
    %c0_23 = arith.constant 0 : index
    %33 = vector.load %arg5[%c0_21, %c0_22, %c0_23] : memref<1x128x40xf32, #tpu.memory_space<vmem>>, vector<1x128x40xf32>
    %34 = vector.shape_cast %33 : vector<1x128x40xf32> to vector<128x40xf32>
    %c0_24 = arith.constant 0 : index
    %c0_25 = arith.constant 0 : index
    %c0_26 = arith.constant 0 : index
    %35 = vector.load %arg6[%c0_24, %c0_25, %c0_26] : memref<1x128x40xf32, #tpu.memory_space<vmem>>, vector<1x128x40xf32>
    %36 = vector.shape_cast %35 : vector<1x128x40xf32> to vector<128x40xf32>
    %cst_27 = arith.constant dense<0.000000e+00> : vector<128x128xf32>
    %37 = tpu.matmul %34, %36, %cst_27 {dimension_numbers = #tpu.dot_dimension_numbers<[1], [1], [0], [0], [0, 0, 1, 0], [], []>} : vector<128x40xf32>, vector<128x40xf32>, vector<128x128xf32> -> vector<128x128xf32>
    %cst_28 = arith.constant 0.000000e+00 : f32
    %38 = vector.broadcast %cst_28 : f32 to vector<128x128xf32>
    %39 = arith.maximumf %37, %38 : vector<128x128xf32>
    %cst_29 = arith.constant dense<0x7F800000> : vector<128xf32>
    %40 = vector.multi_reduction <minimumf>, %39, %cst_29 [1] : vector<128x128xf32> to vector<128xf32>
    %41 = vector.shape_cast %40 : vector<128xf32> to vector<128x1xf32>
    %42 = vector.broadcast %41 : vector<128x1xf32> to vector<128x128xf32>
    %43 = arith.cmpf oeq, %39, %42 : vector<128x128xf32>
    %cst_30 = arith.constant 0x7F800000 : f32
    %44 = vector.broadcast %cst_30 : f32 to vector<128x128xf32>
    %45 = arith.select %43, %16, %44 : vector<128x128xi1>, vector<128x128xf32>
    %cst_31 = arith.constant dense<0x7F800000> : vector<128xf32>
    %46 = vector.multi_reduction <minimumf>, %45, %cst_31 [1] : vector<128x128xf32> to vector<128xf32>
    %47 = vector.shape_cast %46 : vector<128xf32> to vector<128x1xf32>
    %48 = arith.extui %20 : vector<128x1xi1> to vector<128x1xi32>
    %49 = arith.sitofp %48 : vector<128x1xi32> to vector<128x1xf32>
    %cst_32 = arith.constant dense<0.000000e+00> : vector<1xf32>
    %50 = vector.multi_reduction <add>, %49, %cst_32 [0] : vector<128x1xf32> to vector<1xf32>
    %51 = vector.shape_cast %50 : vector<1xf32> to vector<1x1xf32>
    %cst_33 = arith.constant 9.99999996E-13 : f32
    %52 = vector.broadcast %cst_33 : f32 to vector<1x1xf32>
    %53 = arith.addf %51, %52 : vector<1x1xf32>
    %cst_34 = arith.constant 1.482250e-03 : f32
    %54 = vector.broadcast %cst_34 : f32 to vector<128x1xf32>
    %55 = arith.cmpf olt, %47, %54 : vector<128x1xf32>
    %56 = arith.andi %20, %55 : vector<128x1xi1>
    %cst_35 = arith.constant 1.000000e+00 : f32
    %cst_36 = arith.constant 0.000000e+00 : f32
    %57 = vector.broadcast %cst_35 : f32 to vector<128x1xf32>
    %58 = vector.broadcast %cst_36 : f32 to vector<128x1xf32>
    %59 = arith.select %56, %57, %58 : vector<128x1xi1>, vector<128x1xf32>
    %cst_37 = arith.constant dense<0.000000e+00> : vector<1xf32>
    %60 = vector.multi_reduction <add>, %59, %cst_37 [0] : vector<128x1xf32> to vector<1xf32>
    %61 = vector.shape_cast %60 : vector<1xf32> to vector<1x1xf32>
    %62 = arith.divf %61, %53 : vector<1x1xf32>
    %63 = math.sqrt %39 : vector<128x128xf32>
    %cst_38 = arith.constant 1.482250e-03 : f32
    %64 = vector.broadcast %cst_38 : f32 to vector<128x128xf32>
    %65 = arith.cmpf olt, %16, %64 : vector<128x128xf32>
    %cst_39 = arith.constant 1.000000e-01 : f32
    %66 = vector.broadcast %cst_39 : f32 to vector<128x128xf32>
    %67 = arith.subf %63, %66 : vector<128x128xf32>
    %cst_40 = arith.constant 0.000000e+00 : f32
    %68 = vector.broadcast %cst_40 : f32 to vector<128x128xf32>
    %69 = arith.maximumf %67, %68 : vector<128x128xf32>
    %cst_41 = arith.constant 0.000000e+00 : f32
    %70 = vector.broadcast %cst_41 : f32 to vector<128x128xf32>
    %71 = arith.select %65, %69, %70 : vector<128x128xi1>, vector<128x128xf32>
    %cst_42 = arith.constant 1.000000e-01 : f32
    %72 = vector.broadcast %cst_42 : f32 to vector<128x128xf32>
    %73 = arith.subf %63, %72 : vector<128x128xf32>
    %cst_43 = arith.constant 1.000000e+01 : f32
    %74 = vector.broadcast %cst_43 : f32 to vector<128x128xf32>
    %75 = arith.mulf %74, %73 : vector<128x128xf32>
    %76 = arith.mulf %75, %71 : vector<128x128xf32>
    %77 = math.exp %76 : vector<128x128xf32>
    %cst_44 = arith.constant dense<0.000000e+00> : vector<128xf32>
    %78 = vector.multi_reduction <add>, %77, %cst_44 [1] : vector<128x128xf32> to vector<128xf32>
    %79 = vector.shape_cast %78 : vector<128xf32> to vector<128x1xf32>
    %80 = math.log %79 : vector<128x1xf32>
    %cst_45 = arith.constant dense<0.000000e+00> : vector<128xf32>
    %81 = vector.multi_reduction <add>, %77, %cst_45 [0] : vector<128x128xf32> to vector<128xf32>
    %82 = vector.shape_cast %81 : vector<128xf32> to vector<1x128xf32>
    %83 = math.log %82 : vector<1x128xf32>
    %cst_46 = arith.constant 0.00999999977 : f32
    %84 = vector.broadcast %cst_46 : f32 to vector<128x128xf32>
    %85 = arith.cmpf ogt, %16, %84 : vector<128x128xf32>
    %cst_47 = arith.constant 1.400000e+00 : f32
    %86 = vector.broadcast %cst_47 : f32 to vector<128x128xf32>
    %87 = arith.subf %86, %63 : vector<128x128xf32>
    %cst_48 = arith.constant 0.000000e+00 : f32
    %88 = vector.broadcast %cst_48 : f32 to vector<128x128xf32>
    %89 = arith.maximumf %87, %88 : vector<128x128xf32>
    %cst_49 = arith.constant 0.000000e+00 : f32
    %90 = vector.broadcast %cst_49 : f32 to vector<128x128xf32>
    %91 = arith.select %85, %89, %90 : vector<128x128xi1>, vector<128x128xf32>
    %cst_50 = arith.constant 1.400000e+00 : f32
    %92 = vector.broadcast %cst_50 : f32 to vector<128x128xf32>
    %93 = arith.subf %92, %63 : vector<128x128xf32>
    %cst_51 = arith.constant 1.000000e+01 : f32
    %94 = vector.broadcast %cst_51 : f32 to vector<128x128xf32>
    %95 = arith.mulf %94, %93 : vector<128x128xf32>
    %96 = arith.mulf %95, %91 : vector<128x128xf32>
    %97 = math.exp %96 : vector<128x128xf32>
    %cst_52 = arith.constant dense<0.000000e+00> : vector<128xf32>
    %98 = vector.multi_reduction <add>, %97, %cst_52 [1] : vector<128x128xf32> to vector<128xf32>
    %99 = vector.shape_cast %98 : vector<128xf32> to vector<128x1xf32>
    %100 = math.log %99 : vector<128x1xf32>
    %cst_53 = arith.constant dense<0.000000e+00> : vector<128xf32>
    %101 = vector.multi_reduction <add>, %97, %cst_53 [0] : vector<128x128xf32> to vector<128xf32>
    %102 = vector.shape_cast %101 : vector<128xf32> to vector<1x128xf32>
    %103 = math.log %102 : vector<1x128xf32>
    %104 = arith.addf %80, %100 : vector<128x1xf32>
    %cst_54 = arith.constant 0.000000e+00 : f32
    %105 = vector.broadcast %cst_54 : f32 to vector<128x1xf32>
    %106 = arith.maximumf %104, %105 : vector<128x1xf32>
    %107 = math.absf %104 : vector<128x1xf32>
    %cst_55 = arith.constant 0.000000e+00 : f32
    %108 = vector.broadcast %cst_55 : f32 to vector<128x1xf32>
    %109 = arith.subf %108, %107 : vector<128x1xf32>
    %110 = math.exp %109 : vector<128x1xf32>
    %cst_56 = arith.constant 1.000000e+00 : f32
    %111 = vector.broadcast %cst_56 : f32 to vector<128x1xf32>
    %112 = arith.addf %111, %110 : vector<128x1xf32>
    %113 = math.log %112 : vector<128x1xf32>
    %114 = arith.addf %106, %113 : vector<128x1xf32>
    %cst_57 = arith.constant 1.000000e-01 : f32
    %115 = vector.broadcast %cst_57 : f32 to vector<128x1xf32>
    %116 = arith.mulf %114, %115 : vector<128x1xf32>
    %117 = arith.addf %83, %103 : vector<1x128xf32>
    %cst_58 = arith.constant 0.000000e+00 : f32
    %118 = vector.broadcast %cst_58 : f32 to vector<1x128xf32>
    %119 = arith.maximumf %117, %118 : vector<1x128xf32>
    %120 = math.absf %117 : vector<1x128xf32>
    %cst_59 = arith.constant 0.000000e+00 : f32
    %121 = vector.broadcast %cst_59 : f32 to vector<1x128xf32>
    %122 = arith.subf %121, %120 : vector<1x128xf32>
    %123 = math.exp %122 : vector<1x128xf32>
    %cst_60 = arith.constant 1.000000e+00 : f32
    %124 = vector.broadcast %cst_60 : f32 to vector<1x128xf32>
    %125 = arith.addf %124, %123 : vector<1x128xf32>
    %126 = math.log %125 : vector<1x128xf32>
    %127 = arith.addf %119, %126 : vector<1x128xf32>
    %cst_61 = arith.constant 1.000000e-01 : f32
    %128 = vector.broadcast %cst_61 : f32 to vector<1x128xf32>
    %129 = arith.mulf %127, %128 : vector<1x128xf32>
    %130 = arith.andi %20, %24 : vector<128x1xi1>
    %131 = arith.andi %28, %32 : vector<1x128xi1>
    %132 = arith.extui %130 : vector<128x1xi1> to vector<128x1xi32>
    %133 = arith.sitofp %132 : vector<128x1xi32> to vector<128x1xf32>
    %cst_62 = arith.constant dense<0.000000e+00> : vector<1xf32>
    %134 = vector.multi_reduction <add>, %133, %cst_62 [0] : vector<128x1xf32> to vector<1xf32>
    %135 = vector.shape_cast %134 : vector<1xf32> to vector<1x1xf32>
    %cst_63 = arith.constant 1.000000e+00 : f32
    %136 = vector.broadcast %cst_63 : f32 to vector<1x1xf32>
    %137 = arith.maximumf %135, %136 : vector<1x1xf32>
    %138 = arith.extui %131 : vector<1x128xi1> to vector<1x128xi32>
    %139 = arith.sitofp %138 : vector<1x128xi32> to vector<1x128xf32>
    %cst_64 = arith.constant dense<0.000000e+00> : vector<1xf32>
    %140 = vector.multi_reduction <add>, %139, %cst_64 [1] : vector<1x128xf32> to vector<1xf32>
    %141 = vector.shape_cast %140 : vector<1xf32> to vector<1x1xf32>
    %cst_65 = arith.constant 1.000000e+00 : f32
    %142 = vector.broadcast %cst_65 : f32 to vector<1x1xf32>
    %143 = arith.maximumf %141, %142 : vector<1x1xf32>
    %cst_66 = arith.constant 0.000000e+00 : f32
    %144 = vector.broadcast %cst_66 : f32 to vector<128x1xf32>
    %145 = arith.select %130, %116, %144 : vector<128x1xi1>, vector<128x1xf32>
    %cst_67 = arith.constant dense<0.000000e+00> : vector<1xf32>
    %146 = vector.multi_reduction <add>, %145, %cst_67 [0] : vector<128x1xf32> to vector<1xf32>
    %147 = vector.shape_cast %146 : vector<1xf32> to vector<1x1xf32>
    %148 = arith.divf %147, %137 : vector<1x1xf32>
    %cst_68 = arith.constant 0.000000e+00 : f32
    %149 = vector.broadcast %cst_68 : f32 to vector<1x128xf32>
    %150 = arith.select %131, %129, %149 : vector<1x128xi1>, vector<1x128xf32>
    %cst_69 = arith.constant dense<0.000000e+00> : vector<1xf32>
    %151 = vector.multi_reduction <add>, %150, %cst_69 [1] : vector<1x128xf32> to vector<1xf32>
    %152 = vector.shape_cast %151 : vector<1xf32> to vector<1x1xf32>
    %153 = arith.divf %152, %143 : vector<1x1xf32>
    %154 = arith.addf %148, %153 : vector<1x1xf32>
    %cst_70 = arith.constant 5.000000e-01 : f32
    %155 = vector.broadcast %cst_70 : f32 to vector<1x1xf32>
    %156 = arith.mulf %155, %154 : vector<1x1xf32>
    %157 = tpu.iota {dimensions = array<i32: 0>} : vector<128x128xi32>
    %158 = tpu.iota {dimensions = array<i32: 1>} : vector<128x128xi32>
    %159 = arith.cmpi eq, %157, %158 : vector<128x128xi32>
    %cst_71 = arith.constant 0.000000e+00 : f32
    %160 = vector.broadcast %cst_71 : f32 to vector<128x128xf32>
    %161 = arith.select %159, %63, %160 : vector<128x128xi1>, vector<128x128xf32>
    %cst_72 = arith.constant dense<0xFF800000> : vector<128xf32>
    %162 = vector.multi_reduction <maximumf>, %161, %cst_72 [1] : vector<128x128xf32> to vector<128xf32>
    %163 = vector.shape_cast %162 : vector<128xf32> to vector<128x1xf32>
    %cst_73 = arith.constant 1.000000e+30 : f32
    %164 = vector.broadcast %cst_73 : f32 to vector<128x128xf32>
    %165 = arith.select %159, %164, %63 : vector<128x128xi1>, vector<128x128xf32>
    %cst_74 = arith.constant dense<0x7F800000> : vector<128xf32>
    %166 = vector.multi_reduction <minimumf>, %165, %cst_74 [1] : vector<128x128xf32> to vector<128xf32>
    %167 = vector.shape_cast %166 : vector<128xf32> to vector<128x1xf32>
    %168 = arith.subf %163, %167 : vector<128x1xf32>
    %c0_75 = arith.constant 0 : index
    %c0_76 = arith.constant 0 : index
    %c0_77 = arith.constant 0 : index
    %169 = vector.load %arg7[%c0_75, %c0_76, %c0_77] : memref<1x128x1xf32, #tpu.memory_space<vmem>>, vector<1x128x1xf32>
    %170 = vector.shape_cast %169 : vector<1x128x1xf32> to vector<128x1xf32>
    %171 = arith.mulf %168, %170 : vector<128x1xf32>
    %cst_78 = arith.constant dense<0.000000e+00> : vector<1xf32>
    %172 = vector.multi_reduction <add>, %171, %cst_78 [0] : vector<128x1xf32> to vector<1xf32>
    %173 = vector.shape_cast %172 : vector<1xf32> to vector<1x1xf32>
    %cst_79 = arith.constant 7.812500e-03 : f32
    %174 = vector.broadcast %cst_79 : f32 to vector<1x1xf32>
    %175 = arith.mulf %173, %174 : vector<1x1xf32>
    %cst_80 = arith.constant 1.000000e+00 : f32
    %176 = vector.broadcast %cst_80 : f32 to vector<1x1xf32>
    %177 = arith.mulf %176, %156 : vector<1x1xf32>
    %cst_81 = arith.constant 1.000000e+00 : f32
    %178 = vector.broadcast %cst_81 : f32 to vector<1x1xf32>
    %179 = arith.mulf %178, %175 : vector<1x1xf32>
    %180 = arith.addf %177, %179 : vector<1x1xf32>
    %181 = tpu.iota {dimensions = array<i32: 1>} : vector<1x4xi32>
    %c0_i32 = arith.constant 0 : i32
    %182 = vector.broadcast %c0_i32 : i32 to vector<1x4xi32>
    %183 = arith.cmpi eq, %181, %182 : vector<1x4xi32>
    %c1_i32 = arith.constant 1 : i32
    %184 = vector.broadcast %c1_i32 : i32 to vector<1x4xi32>
    %185 = arith.cmpi eq, %181, %184 : vector<1x4xi32>
    %c2_i32 = arith.constant 2 : i32
    %186 = vector.broadcast %c2_i32 : i32 to vector<1x4xi32>
    %187 = arith.cmpi eq, %181, %186 : vector<1x4xi32>
    %188 = vector.shape_cast %175 : vector<1x1xf32> to vector<1x1xf32>
    %189 = vector.broadcast %188 : vector<1x1xf32> to vector<1x4xf32>
    %190 = vector.shape_cast %180 : vector<1x1xf32> to vector<1x1xf32>
    %191 = vector.broadcast %190 : vector<1x1xf32> to vector<1x4xf32>
    %192 = arith.select %187, %189, %191 : vector<1x4xi1>, vector<1x4xf32>
    %193 = vector.shape_cast %156 : vector<1x1xf32> to vector<1x1xf32>
    %194 = vector.broadcast %193 : vector<1x1xf32> to vector<1x4xf32>
    %195 = arith.select %185, %194, %192 : vector<1x4xi1>, vector<1x4xf32>
    %196 = vector.shape_cast %62 : vector<1x1xf32> to vector<1x1xf32>
    %197 = vector.broadcast %196 : vector<1x1xf32> to vector<1x4xf32>
    %198 = arith.select %183, %197, %195 : vector<1x4xi1>, vector<1x4xf32>
    %c0_82 = arith.constant 0 : index
    %c0_83 = arith.constant 0 : index
    %c0_84 = arith.constant 0 : index
    %199 = vector.load %arg8[%c0_82, %c0_83, %c0_84] : memref<1x1x4xf32, #tpu.memory_space<vmem>>, vector<1x1x4xf32>
    %200 = vector.shape_cast %199 : vector<1x1x4xf32> to vector<1x4xf32>
    %201 = vector.shape_cast %198 : vector<1x4xf32> to vector<1x1x4xf32>
    tpu.vector_store %arg8[%c0_82, %c0_83, %c0_84], %201 {strides = array<i32>} : memref<1x1x4xf32, #tpu.memory_space<vmem>>, vector<1x1x4xf32>,
    return
  }
  func.func @transform_0(%arg0: i32) -> (i32, i32, i32) {
    %c0_i32 = arith.constant 0 : i32
    %c0_i32_0 = arith.constant 0 : i32
    %c0_i32_1 = arith.constant 0 : i32
    return %arg0, %c0_i32, %c0_i32_0 : i32, i32, i32
  }
  func.func @transform_1(%arg0: i32) -> (i32, i32, i32) {
    %c0_i32 = arith.constant 0 : i32
    %c0_i32_0 = arith.constant 0 : i32
    %c0_i32_1 = arith.constant 0 : i32
    return %arg0, %c0_i32, %c0_i32_0 : i32, i32, i32
  }
  func.func @transform_2(%arg0: i32) -> (i32, i32, i32) {
    %c0_i32 = arith.constant 0 : i32
    %c0_i32_0 = arith.constant 0 : i32
    %c0_i32_1 = arith.constant 0 : i32
    return %arg0, %c0_i32, %c0_i32_0 : i32, i32, i32
  }
  func.func @transform_3(%arg0: i32) -> (i32, i32, i32) {
    %c0_i32 = arith.constant 0 : i32
    %c0_i32_0 = arith.constant 0 : i32
    %c0_i32_1 = arith.constant 0 : i32
    return %arg0, %c0_i32, %c0_i32_0 : i32, i32, i32
  }
  func.func @transform_4(%arg0: i32) -> (i32, i32, i32) {
    %c0_i32 = arith.constant 0 : i32
    %c0_i32_0 = arith.constant 0 : i32
    %c0_i32_1 = arith.constant 0 : i32
    return %arg0, %c0_i32, %c0_i32_0 : i32, i32, i32
  }
  func.func @transform_5(%arg0: i32) -> (i32, i32, i32) {
    %c0_i32 = arith.constant 0 : i32
    %c0_i32_0 = arith.constant 0 : i32
    %c0_i32_1 = arith.constant 0 : i32
    return %arg0, %c0_i32, %c0_i32_0 : i32, i32, i32
  }
  func.func @transform_6(%arg0: i32) -> (i32, i32, i32) {
    %c0_i32 = arith.constant 0 : i32
    %c0_i32_0 = arith.constant 0 : i32
    %c0_i32_1 = arith.constant 0 : i32
    return %arg0, %c0_i32, %c0_i32_0 : i32, i32, i32
  }
  func.func @transform_7(%arg0: i32) -> (i32, i32, i32) {
    %c0_i32 = arith.constant 0 : i32
    %c0_i32_0 = arith.constant 0 : i32
    %c0_i32_1 = arith.constant 0 : i32
    return %arg0, %c0_i32, %c0_i32_0 : i32, i32, i32
  }
}

</mosaic_0001>

<llo_original>
// kernel: d3feat_loss.1
$region0: #{d3feat_loss.1}
  #allocation0 [shape = 'u32[]', space=smem, size = 0x4, offset = 0x4, fixed_abs, tag = 'smem constant byte address 0x4 - core index']
  #allocation1 [shape = 'u32[144,128]{1,0:T(1,128)}', space=vmem, size = 0x12000, scoped, tag = 'internal scratch']
  %s0 = inlined_call_operand.vmem [shape: f32[1,128,8], index: 0, kind: input, shape index: {}]
  %s1 = inlined_call_operand.vmem [shape: f32[1,128,8], index: 1, kind: input, shape index: {}]
  %s2 = inlined_call_operand.vmem [shape: f32[1,128,1], index: 2, kind: input, shape index: {}]
  %s3 = inlined_call_operand.vmem [shape: f32[1,1,128], index: 3, kind: input, shape index: {}]
  %s4 = inlined_call_operand.vmem [shape: f32[1,128,40], index: 4, kind: input, shape index: {}]
  %s5 = inlined_call_operand.vmem [shape: f32[1,128,40], index: 5, kind: input, shape index: {}]
  %s6 = inlined_call_operand.vmem [shape: f32[1,128,1], index: 6, kind: input, shape index: {}]
  %s7 = inlined_call_operand.vmem [shape: f32[1,1,4], index: 7, kind: output, shape index: {}]
  %s8 = sld [smem:[#allocation0]]
  $region38: #{d3feat_loss.1} parent=0
    _
  %s10 = ssub.s32 1, %s8
  %s11 = scalar_select 0, %s10, %s8
  // Predicated region
  $region2: #{d3feat_loss.1} parent=0 // pred_check
    _
  $region3: #{d3feat_loss.1} parent=0 // pred_check_branch
    %13 = sbr.rel (0) target = $region5
  $region4: #{d3feat_loss.1} parent=0 // pred_region
    _
  $region5: #{d3feat_loss.1} parent=0 // pred_fallthru
    _
  // Predicated region
  $region6: #{d3feat_loss.1} parent=0 // pred_check
    _
  $region7: #{d3feat_loss.1} parent=0 // pred_check_branch
    %15 = sbr.rel (0) target = $region9
  $region8: #{d3feat_loss.1} parent=0 // pred_region
    _
  $region9: #{d3feat_loss.1} parent=0 // pred_fallthru
    _
  // Predicated region
  $region10: #{d3feat_loss.1} parent=0 // pred_check
    _
  $region11: #{d3feat_loss.1} parent=0 // pred_check_branch
    %17 = sbr.rel (0) target = $region13
  $region12: #{d3feat_loss.1} parent=0 // pred_region
    _
  $region13: #{d3feat_loss.1} parent=0 // pred_fallthru
    _
  // Predicated region
  $region14: #{d3feat_loss.1} parent=0 // pred_check
    _
  $region15: #{d3feat_loss.1} parent=0 // pred_check_branch
    %19 = sbr.rel (0) target = $region17
  $region16: #{d3feat_loss.1} parent=0 // pred_region
    _
  $region17: #{d3feat_loss.1} parent=0 // pred_fallthru
    _
  // Predicated region
  $region18: #{d3feat_loss.1} parent=0 // pred_check
    _
  $region19: #{d3feat_loss.1} parent=0 // pred_check_branch
    %21 = sbr.rel (0) target = $region21
  $region20: #{d3feat_loss.1} parent=0 // pred_region
    _
  $region21: #{d3feat_loss.1} parent=0 // pred_fallthru
    _
  // Predicated region
  $region22: #{d3feat_loss.1} parent=0 // pred_check
    _
  $region23: #{d3feat_loss.1} parent=0 // pred_check_branch
    %23 = sbr.rel (0) target = $region25
  $region24: #{d3feat_loss.1} parent=0 // pred_region
    _
  $region25: #{d3feat_loss.1} parent=0 // pred_fallthru
    _
  // Predicated region
  $region26: #{d3feat_loss.1} parent=0 // pred_check
    _
  $region27: #{d3feat_loss.1} parent=0 // pred_check_branch
    %25 = sbr.rel (0) target = $region29
  $region28: #{d3feat_loss.1} parent=0 // pred_region
    _
  $region29: #{d3feat_loss.1} parent=0 // pred_fallthru
    _
  %v26 = vld [vmem:[%s0] sm:$0xff]
  %v27 = vld [vmem:[%s0 + $0x8] sm:$0xff]
  %v28 = vld [vmem:[%s0 + $0x10] sm:$0xff]
  %v29 = vld [vmem:[%s0 + $0x18] sm:$0xff]
  %v30 = vld [vmem:[%s0 + $0x20] sm:$0xff]
  %v31 = vld [vmem:[%s0 + $0x28] sm:$0xff]
  %v32 = vld [vmem:[%s0 + $0x30] sm:$0xff]
  %v33 = vld [vmem:[%s0 + $0x38] sm:$0xff]
  %v34 = vld [vmem:[%s0 + $0x40] sm:$0xff]
  %v35 = vld [vmem:[%s0 + $0x48] sm:$0xff]
  %v36 = vld [vmem:[%s0 + $0x50] sm:$0xff]
  %v37 = vld [vmem:[%s0 + $0x58] sm:$0xff]
  %v38 = vld [vmem:[%s0 + $0x60] sm:$0xff]
  %v39 = vld [vmem:[%s0 + $0x68] sm:$0xff]
  %v40 = vld [vmem:[%s0 + $0x70] sm:$0xff]
  %v41 = vld [vmem:[%s0 + $0x78] sm:$0xff]
  %v42 = vld [vmem:[%s1] sm:$0xff]
  %v43 = vld [vmem:[%s1 + $0x8] sm:$0xff]
  %v44 = vld [vmem:[%s1 + $0x10] sm:$0xff]
  %v45 = vld [vmem:[%s1 + $0x18] sm:$0xff]
  %v46 = vld [vmem:[%s1 + $0x20] sm:$0xff]
  %v47 = vld [vmem:[%s1 + $0x28] sm:$0xff]
  %v48 = vld [vmem:[%s1 + $0x30] sm:$0xff]
  %v49 = vld [vmem:[%s1 + $0x38] sm:$0xff]
  %v50 = vld [vmem:[%s1 + $0x40] sm:$0xff]
  %v51 = vld [vmem:[%s1 + $0x48] sm:$0xff]
  %v52 = vld [vmem:[%s1 + $0x50] sm:$0xff]
  %v53 = vld [vmem:[%s1 + $0x58] sm:$0xff]
  %v54 = vld [vmem:[%s1 + $0x60] sm:$0xff]
  %v55 = vld [vmem:[%s1 + $0x68] sm:$0xff]
  %v56 = vld [vmem:[%s1 + $0x70] sm:$0xff]
  %v57 = vld [vmem:[%s1 + $0x78] sm:$0xff]
  %vm58 = vcmask 64512
  %v60 = vsel %vm58, %v26, 0
  %v63 = vsel %vm58, %v27, 0
  %v66 = vsel %vm58, %v28, 0
  %v69 = vsel %vm58, %v29, 0
  %v72 = vsel %vm58, %v30, 0
  %v75 = vsel %vm58, %v31, 0
  %v78 = vsel %vm58, %v32, 0
  %v81 = vsel %vm58, %v33, 0
  %v84 = vsel %vm58, %v34, 0
  %v87 = vsel %vm58, %v35, 0
  %v90 = vsel %vm58, %v36, 0
  %v93 = vsel %vm58, %v37, 0
  %v96 = vsel %vm58, %v38, 0
  %v99 = vsel %vm58, %v39, 0
  %v102 = vsel %vm58, %v40, 0
  %v105 = vsel %vm58, %v41, 0
  %v108 = vsel %vm58, %v42, 0
  %v111 = vsel %vm58, %v43, 0
  %v114 = vsel %vm58, %v44, 0
  %v117 = vsel %vm58, %v45, 0
  %v120 = vsel %vm58, %v46, 0
  %v123 = vsel %vm58, %v47, 0
  %v126 = vsel %vm58, %v48, 0
  %v129 = vsel %vm58, %v49, 0
  %v132 = vsel %vm58, %v50, 0
  %v135 = vsel %vm58, %v51, 0
  %v138 = vsel %vm58, %v52, 0
  %v141 = vsel %vm58, %v53, 0
  %v144 = vsel %vm58, %v54, 0
  %v147 = vsel %vm58, %v55, 0
  %v150 = vsel %vm58, %v56, 0
  %v153 = vsel %vm58, %v57, 0
  %155 = vmatprep.subr.mxu0 0.0
  %156 = vmatpush1.xpose.msra.mxu0 %v153
  %157 = vmatprep.subr.mxu0 0.0
  %158 = vmatpush1.xpose.msra.mxu0 %v150
  %159 = vmatprep.subr.mxu0 0.0
  %160 = vmatpush1.xpose.msra.mxu0 %v147
  %161 = vmatprep.subr.mxu0 0.0
  %162 = vmatpush1.xpose.msra.mxu0 %v144
  %163 = vmatprep.subr.mxu0 0.0
  %164 = vmatpush1.xpose.msra.mxu0 %v141
  %165 = vmatprep.subr.mxu0 0.0
  %166 = vmatpush1.xpose.msra.mxu0 %v138
  %167 = vmatprep.subr.mxu0 0.0
  %168 = vmatpush1.xpose.msra.mxu0 %v135
  %169 = vmatprep.subr.mxu0 0.0
  %170 = vmatpush1.xpose.msra.mxu0 %v132
  %171 = vmatprep.subr.mxu0 0.0
  %172 = vmatpush1.xpose.msra.mxu0 %v129
  %173 = vmatprep.subr.mxu0 0.0
  %174 = vmatpush1.xpose.msra.mxu0 %v126
  %175 = vmatprep.subr.mxu0 0.0
  %176 = vmatpush1.xpose.msra.mxu0 %v123
  %177 = vmatprep.subr.mxu0 0.0
  %178 = vmatpush1.xpose.msra.mxu0 %v120
  %179 = vmatprep.subr.mxu0 0.0
  %180 = vmatpush1.xpose.msra.mxu0 %v117
  %181 = vmatprep.subr.mxu0 0.0
  %182 = vmatpush1.xpose.msra.mxu0 %v114
  %183 = vmatprep.subr.mxu0 0.0
  %184 = vmatpush1.xpose.msra.mxu0 %v111
  %185 = vmatprep.subr.mxu0 0.0
  %186 = vmatpush1.xpose.msra.mxu0 %v108
  %187 = vmatprep.subr.mxu0 0.0
  %188 = vmatpush2.xpose.msra.mxu0 0.0
  %189 = vmatprep.subr.mxu0 0.0
  %190 = vmatpush2.xpose.msra.mxu0 0.0
  %191 = vmatprep.subr.mxu0 0.0
  %192 = vmatpush2.xpose.msra.mxu0 0.0
  %193 = vmatprep.subr.mxu0 0.0
  %194 = vmatpush2.xpose.msra.mxu0 0.0
  %195 = vmatprep.subr.mxu0 0.0
  %196 = vmatpush2.xpose.msra.mxu0 0.0
  %197 = vmatprep.subr.mxu0 0.0
  %198 = vmatpush2.xpose.msra.mxu0 0.0
  %199 = vmatprep.subr.mxu0 0.0
  %200 = vmatpush2.xpose.msra.mxu0 0.0
  %201 = vmatprep.subr.mxu0 0.0
  %202 = vmatpush2.xpose.msra.mxu0 0.0
  %203 = vmatprep.subr.mxu0 0.0
  %204 = vmatpush2.xpose.msra.mxu0 0.0
  %205 = vmatprep.subr.mxu0 0.0
  %206 = vmatpush2.xpose.msra.mxu0 0.0
  %207 = vmatprep.subr.mxu0 0.0
  %208 = vmatpush2.xpose.msra.mxu0 0.0
  %209 = vmatprep.subr.mxu0 0.0
  %210 = vmatpush2.xpose.msra.mxu0 0.0
  %211 = vmatprep.subr.mxu0 0.0
  %212 = vmatpush2.xpose.msra.mxu0 0.0
  %213 = vmatprep.subr.mxu0 0.0
  %214 = vmatpush2.xpose.msra.mxu0 0.0
  %215 = vmatprep.subr.mxu0 0.0
  %216 = vmatpush2.xpose.msra.mxu0 0.0
  %217 = vmatprep.subr.mxu0 0.0
  %218 = vmatpush2.xpose.msra.mxu0 0.0
  %219 = vmatprep.mubr.f32.mxu0 0.0
  %220 = vmatmul.mubr.f32.gmra.mxu0 %v60
  %v221 = vpop.f32.mrf.mxu0
  %v222 = vadd.f32 0.0, %v221
  %v223 = vpop.f32.mrf.mxu0
  %224 = vmatprep.mubr.f32.mxu0 0.0
  %225 = vmatmul.mubr.f32.gmra.mxu0 %v63
  %v226 = vpop.f32.mrf.mxu0
  %v227 = vadd.f32 0.0, %v226
  %v228 = vpop.f32.mrf.mxu0
  %229 = vmatprep.mubr.f32.mxu0 0.0
  %230 = vmatmul.mubr.f32.gmra.mxu0 %v66
  %v231 = vpop.f32.mrf.mxu0
  %v232 = vadd.f32 0.0, %v231
  %v233 = vpop.f32.mrf.mxu0
  %234 = vmatprep.mubr.f32.mxu0 0.0
  %235 = vmatmul.mubr.f32.gmra.mxu0 %v69
  %v236 = vpop.f32.mrf.mxu0
  %v237 = vadd.f32 0.0, %v236
  %v238 = vpop.f32.mrf.mxu0
  %239 = vmatprep.mubr.f32.mxu0 0.0
  %240 = vmatmul.mubr.f32.gmra.mxu0 %v72
  %v241 = vpop.f32.mrf.mxu0
  %v242 = vadd.f32 0.0, %v241
  %v243 = vpop.f32.mrf.mxu0
  %244 = vmatprep.mubr.f32.mxu0 0.0
  %245 = vmatmul.mubr.f32.gmra.mxu0 %v75
  %v246 = vpop.f32.mrf.mxu0
  %v247 = vadd.f32 0.0, %v246
  %v248 = vpop.f32.mrf.mxu0
  %249 = vmatprep.mubr.f32.mxu0 0.0
  %250 = vmatmul.mubr.f32.gmra.mxu0 %v78
  %v251 = vpop.f32.mrf.mxu0
  %v252 = vadd.f32 0.0, %v251
  %v253 = vpop.f32.mrf.mxu0
  %254 = vmatprep.mubr.f32.mxu0 0.0
  %255 = vmatmul.mubr.f32.gmra.mxu0 %v81
  %v256 = vpop.f32.mrf.mxu0
  %v257 = vadd.f32 0.0, %v256
  %v258 = vpop.f32.mrf.mxu0
  %259 = vmatprep.mubr.f32.mxu0 0.0
  %260 = vmatmul.mubr.f32.gmra.mxu0 %v84
  %v261 = vpop.f32.mrf.mxu0
  %v262 = vadd.f32 0.0, %v261
  %v263 = vpop.f32.mrf.mxu0
  %264 = vmatprep.mubr.f32.mxu0 0.0
  %265 = vmatmul.mubr.f32.gmra.mxu0 %v87
  %v266 = vpop.f32.mrf.mxu0
  %v267 = vadd.f32 0.0, %v266
  %v268 = vpop.f32.mrf.mxu0
  %269 = vmatprep.mubr.f32.mxu0 0.0
  %270 = vmatmul.mubr.f32.gmra.mxu0 %v90
  %v271 = vpop.f32.mrf.mxu0
  %v272 = vadd.f32 0.0, %v271
  %v273 = vpop.f32.mrf.mxu0
  %274 = vmatprep.mubr.f32.mxu0 0.0
  %275 = vmatmul.mubr.f32.gmra.mxu0 %v93
  %v276 = vpop.f32.mrf.mxu0
  %v277 = vadd.f32 0.0, %v276
  %v278 = vpop.f32.mrf.mxu0
  %279 = vmatprep.mubr.f32.mxu0 0.0
  %280 = vmatmul.mubr.f32.gmra.mxu0 %v96
  %v281 = vpop.f32.mrf.mxu0
  %v282 = vadd.f32 0.0, %v281
  %v283 = vpop.f32.mrf.mxu0
  %284 = vmatprep.mubr.f32.mxu0 0.0
  %285 = vmatmul.mubr.f32.gmra.mxu0 %v99
  %v286 = vpop.f32.mrf.mxu0
  %v287 = vadd.f32 0.0, %v286
  %v288 = vpop.f32.mrf.mxu0
  %289 = vmatprep.mubr.f32.mxu0 0.0
  %290 = vmatmul.mubr.f32.gmra.mxu0 %v102
  %v291 = vpop.f32.mrf.mxu0
  %v292 = vadd.f32 0.0, %v291
  %v293 = vpop.f32.mrf.mxu0
  %294 = vmatprep.mubr.f32.mxu0 0.0
  %295 = vmatmul.mubr.f32.gmra.mxu0 %v105
  %v296 = vpop.f32.mrf.mxu0
  %v297 = vadd.f32 0.0, %v296
  %v298 = vpop.f32.mrf.mxu0
  %299 = vdwg.mxu0
  %v300 = vld [vmem:[%s2] sm:$0xff]
  %v301 = vld [vmem:[%s2 + $0x8] sm:$0xff]
  %v302 = vld [vmem:[%s2 + $0x10] sm:$0xff]
  %v303 = vld [vmem:[%s2 + $0x18] sm:$0xff]
  %v304 = vld [vmem:[%s2 + $0x20] sm:$0xff]
  %v305 = vld [vmem:[%s2 + $0x28] sm:$0xff]
  %v306 = vld [vmem:[%s2 + $0x30] sm:$0xff]
  %v307 = vld [vmem:[%s2 + $0x38] sm:$0xff]
  %v308 = vld [vmem:[%s2 + $0x40] sm:$0xff]
  %v309 = vld [vmem:[%s2 + $0x48] sm:$0xff]
  %v310 = vld [vmem:[%s2 + $0x50] sm:$0xff]
  %v311 = vld [vmem:[%s2 + $0x58] sm:$0xff]
  %v312 = vld [vmem:[%s2 + $0x60] sm:$0xff]
  %v313 = vld [vmem:[%s2 + $0x68] sm:$0xff]
  %v314 = vld [vmem:[%s2 + $0x70] sm:$0xff]
  %v315 = vld [vmem:[%s2 + $0x78] sm:$0xff]
  %v316 = vld [vmem:[%s3] sm:$0x1]
  %318 = vset.pattern.permute.xlu0 0
  %319 = vperm.xlu0 %318, %v300
  %v320 = vpop.permute.xlu0 %319
  %323 = vset.pattern.permute.xlu0 0
  %324 = vperm.xlu0 %323, %v301
  %v325 = vpop.permute.xlu0 %324
  %328 = vset.pattern.permute.xlu0 0
  %329 = vperm.xlu0 %328, %v302
  %v330 = vpop.permute.xlu0 %329
  %333 = vset.pattern.permute.xlu0 0
  %334 = vperm.xlu0 %333, %v303
  %v335 = vpop.permute.xlu0 %334
  %338 = vset.pattern.permute.xlu0 0
  %339 = vperm.xlu0 %338, %v304
  %v340 = vpop.permute.xlu0 %339
  %343 = vset.pattern.permute.xlu0 0
  %344 = vperm.xlu0 %343, %v305
  %v345 = vpop.permute.xlu0 %344
  %348 = vset.pattern.permute.xlu0 0
  %349 = vperm.xlu0 %348, %v306
  %v350 = vpop.permute.xlu0 %349
  %353 = vset.pattern.permute.xlu0 0
  %354 = vperm.xlu0 %353, %v307
  %v355 = vpop.permute.xlu0 %354
  %358 = vset.pattern.permute.xlu0 0
  %359 = vperm.xlu0 %358, %v308
  %v360 = vpop.permute.xlu0 %359
  %363 = vset.pattern.permute.xlu0 0
  %364 = vperm.xlu0 %363, %v309
  %v365 = vpop.permute.xlu0 %364
  %368 = vset.pattern.permute.xlu0 0
  %369 = vperm.xlu0 %368, %v310
  %v370 = vpop.permute.xlu0 %369
  %373 = vset.pattern.permute.xlu0 0
  %374 = vperm.xlu0 %373, %v311
  %v375 = vpop.permute.xlu0 %374
  %378 = vset.pattern.permute.xlu0 0
  %379 = vperm.xlu0 %378, %v312
  %v380 = vpop.permute.xlu0 %379
  %383 = vset.pattern.permute.xlu0 0
  %384 = vperm.xlu0 %383, %v313
  %v385 = vpop.permute.xlu0 %384
  %388 = vset.pattern.permute.xlu0 0
  %389 = vperm.xlu0 %388, %v314
  %v390 = vpop.permute.xlu0 %389
  %393 = vset.pattern.permute.xlu0 0
  %394 = vperm.xlu0 %393, %v315
  %v395 = vpop.permute.xlu0 %394
  %v398 = vlaneseq
  %v399 = vshrl.u32 %v398, 7
  %v400 = vsub.s32 0, %v399
  %v401 = vrot.slane %v316, %v400
  %v403 = vadd.f32 %v320, %v401
  %v404 = vadd.f32 %v325, %v401
  %v405 = vadd.f32 %v330, %v401
  %v406 = vadd.f32 %v335, %v401
  %v407 = vadd.f32 %v340, %v401
  %v408 = vadd.f32 %v345, %v401
  %v409 = vadd.f32 %v350, %v401
  %v410 = vadd.f32 %v355, %v401
  %v411 = vadd.f32 %v360, %v401
  %v412 = vadd.f32 %v365, %v401
  %v413 = vadd.f32 %v370, %v401
  %v414 = vadd.f32 %v375, %v401
  %v415 = vadd.f32 %v380, %v401
  %v416 = vadd.f32 %v385, %v401
  %v417 = vadd.f32 %v390, %v401
  %v418 = vadd.f32 %v395, %v401
  %v419 = vmul.f32 %v222, 2.0
  %v420 = vmul.f32 %v227, 2.0
  %v421 = vmul.f32 %v232, 2.0
  %v422 = vmul.f32 %v237, 2.0
  %v423 = vmul.f32 %v242, 2.0
  %v424 = vmul.f32 %v247, 2.0
  %v425 = vmul.f32 %v252, 2.0
  %v426 = vmul.f32 %v257, 2.0
  %v427 = vmul.f32 %v262, 2.0
  %v428 = vmul.f32 %v267, 2.0
  %v429 = vmul.f32 %v272, 2.0
  %v430 = vmul.f32 %v277, 2.0
  %v431 = vmul.f32 %v282, 2.0
  %v432 = vmul.f32 %v287, 2.0
  %v433 = vmul.f32 %v292, 2.0
  %v434 = vmul.f32 %v297, 2.0
  %v435 = vsub.f32 %v403, %v419
  %v436 = vsub.f32 %v404, %v420
  %v437 = vsub.f32 %v405, %v421
  %v438 = vsub.f32 %v406, %v422
  %v439 = vsub.f32 %v407, %v423
  %v440 = vsub.f32 %v408, %v424
  %v441 = vsub.f32 %v409, %v425
  %v442 = vsub.f32 %v410, %v426
  %v443 = vsub.f32 %v411, %v427
  %v444 = vsub.f32 %v412, %v428
  %v445 = vsub.f32 %v413, %v429
  %v446 = vsub.f32 %v414, %v430
  %v447 = vsub.f32 %v415, %v431
  %v448 = vsub.f32 %v416, %v432
  %v449 = vsub.f32 %v417, %v433
  %v450 = vsub.f32 %v418, %v434
  %v451 = vmax.f32 %v435, 0.0
  %v452 = vmax.f32 %v436, 0.0
  %v453 = vmax.f32 %v437, 0.0
  %v454 = vmax.f32 %v438, 0.0
  %v455 = vmax.f32 %v439, 0.0
  %v456 = vmax.f32 %v440, 0.0
  %v457 = vmax.f32 %v441, 0.0
  %v458 = vmax.f32 %v442, 0.0
  %v459 = vmax.f32 %v443, 0.0
  %v460 = vmax.f32 %v444, 0.0
  %v461 = vmax.f32 %v445, 0.0
  %v462 = vmax.f32 %v446, 0.0
  %v463 = vmax.f32 %v447, 0.0
  %v464 = vmax.f32 %v448, 0.0
  %v465 = vmax.f32 %v449, 0.0
  %v466 = vmax.f32 %v450, 0.0
  %467 = vmin.xlane.f32.xlu0 %v451
  %v468 = vpop.xlane.xlu0 %467
  %469 = vmin.xlane.f32.xlu0 %v452
  %v470 = vpop.xlane.xlu0 %469
  %471 = vmin.xlane.f32.xlu0 %v453
  %v472 = vpop.xlane.xlu0 %471
  %473 = vmin.xlane.f32.xlu0 %v454
  %v474 = vpop.xlane.xlu0 %473
  %475 = vmin.xlane.f32.xlu0 %v455
  %v476 = vpop.xlane.xlu0 %475
  %477 = vmin.xlane.f32.xlu0 %v456
  %v478 = vpop.xlane.xlu0 %477
  %479 = vmin.xlane.f32.xlu0 %v457
  %v480 = vpop.xlane.xlu0 %479
  %481 = vmin.xlane.f32.xlu0 %v458
  %v482 = vpop.xlane.xlu0 %481
  %483 = vmin.xlane.f32.xlu0 %v459
  %v484 = vpop.xlane.xlu0 %483
  %485 = vmin.xlane.f32.xlu0 %v460
  %v486 = vpop.xlane.xlu0 %485
  %487 = vmin.xlane.f32.xlu0 %v461
  %v488 = vpop.xlane.xlu0 %487
  %489 = vmin.xlane.f32.xlu0 %v462
  %v490 = vpop.xlane.xlu0 %489
  %491 = vmin.xlane.f32.xlu0 %v463
  %v492 = vpop.xlane.xlu0 %491
  %493 = vmin.xlane.f32.xlu0 %v464
  %v494 = vpop.xlane.xlu0 %493
  %495 = vmin.xlane.f32.xlu0 %v465
  %v496 = vpop.xlane.xlu0 %495
  %497 = vmin.xlane.f32.xlu0 %v466
  %v498 = vpop.xlane.xlu0 %497
  %vm499 = vcmp.lt.f32.partialorder %v468, 0.00148225
  %vm500 = vcmp.lt.f32.partialorder %v470, 0.00148225
  %vm501 = vcmp.lt.f32.partialorder %v472, 0.00148225
  %vm502 = vcmp.lt.f32.partialorder %v474, 0.00148225
  %vm503 = vcmp.lt.f32.partialorder %v476, 0.00148225
  %vm504 = vcmp.lt.f32.partialorder %v478, 0.00148225
  %vm505 = vcmp.lt.f32.partialorder %v480, 0.00148225
  %vm506 = vcmp.lt.f32.partialorder %v482, 0.00148225
  %vm507 = vcmp.lt.f32.partialorder %v484, 0.00148225
  %vm508 = vcmp.lt.f32.partialorder %v486, 0.00148225
  %vm509 = vcmp.lt.f32.partialorder %v488, 0.00148225
  %vm510 = vcmp.lt.f32.partialorder %v490, 0.00148225
  %vm511 = vcmp.lt.f32.partialorder %v492, 0.00148225
  %vm512 = vcmp.lt.f32.partialorder %v494, 0.00148225
  %vm513 = vcmp.lt.f32.partialorder %v496, 0.00148225
  %vm514 = vcmp.lt.f32.partialorder %v498, 0.00148225
  %515 = vmax.xlane.f32.xlu0 %v451
  %v516 = vpop.xlane.xlu0 %515
  %517 = vmax.xlane.f32.xlu0 %v452
  %v518 = vpop.xlane.xlu0 %517
  %519 = vmax.xlane.f32.xlu0 %v453
  %v520 = vpop.xlane.xlu0 %519
  %521 = vmax.xlane.f32.xlu0 %v454
  %v522 = vpop.xlane.xlu0 %521
  %523 = vmax.xlane.f32.xlu0 %v455
  %v524 = vpop.xlane.xlu0 %523
  %525 = vmax.xlane.f32.xlu0 %v456
  %v526 = vpop.xlane.xlu0 %525
  %527 = vmax.xlane.f32.xlu0 %v457
  %v528 = vpop.xlane.xlu0 %527
  %529 = vmax.xlane.f32.xlu0 %v458
  %v530 = vpop.xlane.xlu0 %529
  %531 = vmax.xlane.f32.xlu0 %v459
  %v532 = vpop.xlane.xlu0 %531
  %533 = vmax.xlane.f32.xlu0 %v460
  %v534 = vpop.xlane.xlu0 %533
  %535 = vmax.xlane.f32.xlu0 %v461
  %v536 = vpop.xlane.xlu0 %535
  %537 = vmax.xlane.f32.xlu0 %v462
  %v538 = vpop.xlane.xlu0 %537
  %539 = vmax.xlane.f32.xlu0 %v463
  %v540 = vpop.xlane.xlu0 %539
  %541 = vmax.xlane.f32.xlu0 %v464
  %v542 = vpop.xlane.xlu0 %541
  %543 = vmax.xlane.f32.xlu0 %v465
  %v544 = vpop.xlane.xlu0 %543
  %545 = vmax.xlane.f32.xlu0 %v466
  %v546 = vpop.xlane.xlu0 %545
  %vm547 = vcmp.gt.f32.partialorder %v516, 0.01
  %vm548 = vcmp.gt.f32.partialorder %v518, 0.01
  %vm549 = vcmp.gt.f32.partialorder %v520, 0.01
  %vm550 = vcmp.gt.f32.partialorder %v522, 0.01
  %vm551 = vcmp.gt.f32.partialorder %v524, 0.01
  %vm552 = vcmp.gt.f32.partialorder %v526, 0.01
  %vm553 = vcmp.gt.f32.partialorder %v528, 0.01
  %vm554 = vcmp.gt.f32.partialorder %v530, 0.01
  %vm555 = vcmp.gt.f32.partialorder %v532, 0.01
  %vm556 = vcmp.gt.f32.partialorder %v534, 0.01
  %vm557 = vcmp.gt.f32.partialorder %v536, 0.01
  %vm558 = vcmp.gt.f32.partialorder %v538, 0.01
  %vm559 = vcmp.gt.f32.partialorder %v540, 0.01
  %vm560 = vcmp.gt.f32.partialorder %v542, 0.01
  %vm561 = vcmp.gt.f32.partialorder %v544, 0.01
  %vm562 = vcmp.gt.f32.partialorder %v546, 0.01
  %v563 = vmin.f32 %v451, %v455
  %v564 = vmin.f32 %v452, %v456
  %v565 = vmin.f32 %v453, %v457
  %v566 = vmin.f32 %v454, %v458
  %v567 = vmin.f32 %v563, %v459
  %v568 = vmin.f32 %v564, %v460
  %v569 = vmin.f32 %v565, %v461
  %v570 = vmin.f32 %v566, %v462
  %v571 = vmin.f32 %v567, %v463
  %v572 = vmin.f32 %v568, %v464
  %v573 = vmin.f32 %v569, %v465
  %v574 = vmin.f32 %v570, %v466
  %v575 = vmin.f32 %v571, %v572
  %v576 = vmin.f32 %v573, %v574
  %v577 = vmin.f32 %v575, %v576
  %v578 = vrot.slane %v577, 4
  %v579 = vmin.f32 %v577, %v578
  %v580 = vrot.slane %v579, 2
  %v581 = vmin.f32 %v579, %v580
  %v582 = vrot.slane %v581, 1
  %v583 = vmin.f32 %v581, %v582
  %vm584 = vcmp.lt.f32.partialorder %v583, 0.00148225
  %v585 = vmax.f32 %v451, %v455
  %v586 = vmax.f32 %v452, %v456
  %v587 = vmax.f32 %v453, %v457
  %v588 = vmax.f32 %v454, %v458
  %v589 = vmax.f32 %v585, %v459
  %v590 = vmax.f32 %v586, %v460
  %v591 = vmax.f32 %v587, %v461
  %v592 = vmax.f32 %v588, %v462
  %v593 = vmax.f32 %v589, %v463
  %v594 = vmax.f32 %v590, %v464
  %v595 = vmax.f32 %v591, %v465
  %v596 = vmax.f32 %v592, %v466
  %v597 = vmax.f32 %v593, %v594
  %v598 = vmax.f32 %v595, %v596
  %v599 = vmax.f32 %v597, %v598
  %v600 = vrot.slane %v599, 4
  %v601 = vmax.f32 %v599, %v600
  %v602 = vrot.slane %v601, 2
  %v603 = vmax.f32 %v601, %v602
  %v604 = vrot.slane %v603, 1
  %v605 = vmax.f32 %v603, %v604
  %vm606 = vcmp.gt.f32.partialorder %v605, 0.01
  %v607 = vld [vmem:[%s4] sm:$0xff]
  %v608 = vld [vmem:[%s4 + $0x8] sm:$0xff]
  %v609 = vld [vmem:[%s4 + $0x10] sm:$0xff]
  %v610 = vld [vmem:[%s4 + $0x18] sm:$0xff]
  %v611 = vld [vmem:[%s4 + $0x20] sm:$0xff]
  %v612 = vld [vmem:[%s4 + $0x28] sm:$0xff]
  %v613 = vld [vmem:[%s4 + $0x30] sm:$0xff]
  %v614 = vld [vmem:[%s4 + $0x38] sm:$0xff]
  %v615 = vld [vmem:[%s4 + $0x40] sm:$0xff]
  %v616 = vld [vmem:[%s4 + $0x48] sm:$0xff]
  %v617 = vld [vmem:[%s4 + $0x50] sm:$0xff]
  %v618 = vld [vmem:[%s4 + $0x58] sm:$0xff]
  %v619 = vld [vmem:[%s4 + $0x60] sm:$0xff]
  %v620 = vld [vmem:[%s4 + $0x68] sm:$0xff]
  %v621 = vld [vmem:[%s4 + $0x70] sm:$0xff]
  %v622 = vld [vmem:[%s4 + $0x78] sm:$0xff]
  %v623 = vld [vmem:[%s5] sm:$0xff]
  %v624 = vld [vmem:[%s5 + $0x8] sm:$0xff]
  %v625 = vld [vmem:[%s5 + $0x10] sm:$0xff]
  %v626 = vld [vmem:[%s5 + $0x18] sm:$0xff]
  %v627 = vld [vmem:[%s5 + $0x20] sm:$0xff]
  %v628 = vld [vmem:[%s5 + $0x28] sm:$0xff]
  %v629 = vld [vmem:[%s5 + $0x30] sm:$0xff]
  %v630 = vld [vmem:[%s5 + $0x38] sm:$0xff]
  %v631 = vld [vmem:[%s5 + $0x40] sm:$0xff]
  %v632 = vld [vmem:[%s5 + $0x48] sm:$0xff]
  %v633 = vld [vmem:[%s5 + $0x50] sm:$0xff]
  %v634 = vld [vmem:[%s5 + $0x58] sm:$0xff]
  %v635 = vld [vmem:[%s5 + $0x60] sm:$0xff]
  %v636 = vld [vmem:[%s5 + $0x68] sm:$0xff]
  %v637 = vld [vmem:[%s5 + $0x70] sm:$0xff]
  %v638 = vld [vmem:[%s5 + $0x78] sm:$0xff]
  %vm639 = vcmask 326656
  %v641 = vsel %vm639, %v607, 0
  %v644 = vsel %vm639, %v608, 0
  %v647 = vsel %vm639, %v609, 0
  %v650 = vsel %vm639, %v610, 0
  %v653 = vsel %vm639, %v611, 0
  %v656 = vsel %vm639, %v612, 0
  %v659 = vsel %vm639, %v613, 0
  %v662 = vsel %vm639, %v614, 0
  %v665 = vsel %vm639, %v615, 0
  %v668 = vsel %vm639, %v616, 0
  %v671 = vsel %vm639, %v617, 0
  %v674 = vsel %vm639, %v618, 0
  %v677 = vsel %vm639, %v619, 0
  %v680 = vsel %vm639, %v620, 0
  %v683 = vsel %vm639, %v621, 0
  %v686 = vsel %vm639, %v622, 0
  %v689 = vsel %vm639, %v623, 0
  %v692 = vsel %vm639, %v624, 0
  %v695 = vsel %vm639, %v625, 0
  %v698 = vsel %vm639, %v626, 0
  %v701 = vsel %vm639, %v627, 0
  %v704 = vsel %vm639, %v628, 0
  %v707 = vsel %vm639, %v629, 0
  %v710 = vsel %vm639, %v630, 0
  %v713 = vsel %vm639, %v631, 0
  %v716 = vsel %vm639, %v632, 0
  %v719 = vsel %vm639, %v633, 0
  %v722 = vsel %vm639, %v634, 0
  %v725 = vsel %vm639, %v635, 0
  %v728 = vsel %vm639, %v636, 0
  %v731 = vsel %vm639, %v637, 0
  %v734 = vsel %vm639, %v638, 0
  %736 = vmatprep.subr.mxu0 0.0
  %737 = vmatpush1.xpose.msra.mxu0 %v734
  %738 = vmatprep.subr.mxu0 0.0
  %739 = vmatpush1.xpose.msra.mxu0 %v731
  %740 = vmatprep.subr.mxu0 0.0
  %741 = vmatpush1.xpose.msra.mxu0 %v728
  %742 = vmatprep.subr.mxu0 0.0
  %743 = vmatpush1.xpose.msra.mxu0 %v725
  %744 = vmatprep.subr.mxu0 0.0
  %745 = vmatpush1.xpose.msra.mxu0 %v722
  %746 = vmatprep.subr.mxu0 0.0
  %747 = vmatpush1.xpose.msra.mxu0 %v719
  %748 = vmatprep.subr.mxu0 0.0
  %749 = vmatpush1.xpose.msra.mxu0 %v716
  %750 = vmatprep.subr.mxu0 0.0
  %751 = vmatpush1.xpose.msra.mxu0 %v713
  %752 = vmatprep.subr.mxu0 0.0
  %753 = vmatpush1.xpose.msra.mxu0 %v710
  %754 = vmatprep.subr.mxu0 0.0
  %755 = vmatpush1.xpose.msra.mxu0 %v707
  %756 = vmatprep.subr.mxu0 0.0
  %757 = vmatpush1.xpose.msra.mxu0 %v704
  %758 = vmatprep.subr.mxu0 0.0
  %759 = vmatpush1.xpose.msra.mxu0 %v701
  %760 = vmatprep.subr.mxu0 0.0
  %761 = vmatpush1.xpose.msra.mxu0 %v698
  %762 = vmatprep.subr.mxu0 0.0
  %763 = vmatpush1.xpose.msra.mxu0 %v695
  %764 = vmatprep.subr.mxu0 0.0
  %765 = vmatpush1.xpose.msra.mxu0 %v692
  %766 = vmatprep.subr.mxu0 0.0
  %767 = vmatpush1.xpose.msra.mxu0 %v689
  %768 = vmatprep.subr.mxu0 0.0
  %769 = vmatpush2.xpose.msra.mxu0 0.0
  %770 = vmatprep.subr.mxu0 0.0
  %771 = vmatpush2.xpose.msra.mxu0 0.0
  %772 = vmatprep.subr.mxu0 0.0
  %773 = vmatpush2.xpose.msra.mxu0 0.0
  %774 = vmatprep.subr.mxu0 0.0
  %775 = vmatpush2.xpose.msra.mxu0 0.0
  %776 = vmatprep.subr.mxu0 0.0
  %777 = vmatpush2.xpose.msra.mxu0 0.0
  %778 = vmatprep.subr.mxu0 0.0
  %779 = vmatpush2.xpose.msra.mxu0 0.0
  %780 = vmatprep.subr.mxu0 0.0
  %781 = vmatpush2.xpose.msra.mxu0 0.0
  %782 = vmatprep.subr.mxu0 0.0
  %783 = vmatpush2.xpose.msra.mxu0 0.0
  %784 = vmatprep.subr.mxu0 0.0
  %785 = vmatpush2.xpose.msra.mxu0 0.0
  %786 = vmatprep.subr.mxu0 0.0
  %787 = vmatpush2.xpose.msra.mxu0 0.0
  %788 = vmatprep.subr.mxu0 0.0
  %789 = vmatpush2.xpose.msra.mxu0 0.0
  %790 = vmatprep.subr.mxu0 0.0
  %791 = vmatpush2.xpose.msra.mxu0 0.0
  %792 = vmatprep.subr.mxu0 0.0
  %793 = vmatpush2.xpose.msra.mxu0 0.0
  %794 = vmatprep.subr.mxu0 0.0
  %795 = vmatpush2.xpose.msra.mxu0 0.0
  %796 = vmatprep.subr.mxu0 0.0
  %797 = vmatpush2.xpose.msra.mxu0 0.0
  %798 = vmatprep.subr.mxu0 0.0
  %799 = vmatpush2.xpose.msra.mxu0 0.0
  %800 = vmatprep.mubr.f32.mxu0 0.0
  %801 = vmatmul.mubr.f32.gmra.mxu0 %v641
  %v802 = vpop.f32.mrf.mxu0
  %v803 = vadd.f32 0.0, %v802
  %v804 = vpop.f32.mrf.mxu0
  %805 = vmatprep.mubr.f32.mxu0 0.0
  %806 = vmatmul.mubr.f32.gmra.mxu0 %v644
  %v807 = vpop.f32.mrf.mxu0
  %v808 = vadd.f32 0.0, %v807
  %v809 = vpop.f32.mrf.mxu0
  %810 = vmatprep.mubr.f32.mxu0 0.0
  %811 = vmatmul.mubr.f32.gmra.mxu0 %v647
  %v812 = vpop.f32.mrf.mxu0
  %v813 = vadd.f32 0.0, %v812
  %v814 = vpop.f32.mrf.mxu0
  %815 = vmatprep.mubr.f32.mxu0 0.0
  %816 = vmatmul.mubr.f32.gmra.mxu0 %v650
  %v817 = vpop.f32.mrf.mxu0
  %v818 = vadd.f32 0.0, %v817
  %v819 = vpop.f32.mrf.mxu0
  %820 = vmatprep.mubr.f32.mxu0 0.0
  %821 = vmatmul.mubr.f32.gmra.mxu0 %v653
  %v822 = vpop.f32.mrf.mxu0
  %v823 = vadd.f32 0.0, %v822
  %v824 = vpop.f32.mrf.mxu0
  %825 = vmatprep.mubr.f32.mxu0 0.0
  %826 = vmatmul.mubr.f32.gmra.mxu0 %v656
  %v827 = vpop.f32.mrf.mxu0
  %v828 = vadd.f32 0.0, %v827
  %v829 = vpop.f32.mrf.mxu0
  %830 = vmatprep.mubr.f32.mxu0 0.0
  %831 = vmatmul.mubr.f32.gmra.mxu0 %v659
  %v832 = vpop.f32.mrf.mxu0
  %v833 = vadd.f32 0.0, %v832
  %v834 = vpop.f32.mrf.mxu0
  %835 = vmatprep.mubr.f32.mxu0 0.0
  %836 = vmatmul.mubr.f32.gmra.mxu0 %v662
  %v837 = vpop.f32.mrf.mxu0
  %v838 = vadd.f32 0.0, %v837
  %v839 = vpop.f32.mrf.mxu0
  %840 = vmatprep.mubr.f32.mxu0 0.0
  %841 = vmatmul.mubr.f32.gmra.mxu0 %v665
  %v842 = vpop.f32.mrf.mxu0
  %v843 = vadd.f32 0.0, %v842
  %v844 = vpop.f32.mrf.mxu0
  %845 = vmatprep.mubr.f32.mxu0 0.0
  %846 = vmatmul.mubr.f32.gmra.mxu0 %v668
  %v847 = vpop.f32.mrf.mxu0
  %v848 = vadd.f32 0.0, %v847
  %v849 = vpop.f32.mrf.mxu0
  %850 = vmatprep.mubr.f32.mxu0 0.0
  %851 = vmatmul.mubr.f32.gmra.mxu0 %v671
  %v852 = vpop.f32.mrf.mxu0
  %v853 = vadd.f32 0.0, %v852
  %v854 = vpop.f32.mrf.mxu0
  %855 = vmatprep.mubr.f32.mxu0 0.0
  %856 = vmatmul.mubr.f32.gmra.mxu0 %v674
  %v857 = vpop.f32.mrf.mxu0
  %v858 = vadd.f32 0.0, %v857
  %v859 = vpop.f32.mrf.mxu0
  %860 = vmatprep.mubr.f32.mxu0 0.0
  %861 = vmatmul.mubr.f32.gmra.mxu0 %v677
  %v862 = vpop.f32.mrf.mxu0
  %v863 = vadd.f32 0.0, %v862
  %v864 = vpop.f32.mrf.mxu0
  %865 = vmatprep.mubr.f32.mxu0 0.0
  %866 = vmatmul.mubr.f32.gmra.mxu0 %v680
  %v867 = vpop.f32.mrf.mxu0
  %v868 = vadd.f32 0.0, %v867
  %v869 = vpop.f32.mrf.mxu0
  %870 = vmatprep.mubr.f32.mxu0 0.0
  %871 = vmatmul.mubr.f32.gmra.mxu0 %v683
  %v872 = vpop.f32.mrf.mxu0
  %v873 = vadd.f32 0.0, %v872
  %v874 = vpop.f32.mrf.mxu0
  %875 = vmatprep.mubr.f32.mxu0 0.0
  %876 = vmatmul.mubr.f32.gmra.mxu0 %v686
  %v877 = vpop.f32.mrf.mxu0
  %v878 = vadd.f32 0.0, %v877
  %v879 = vpop.f32.mrf.mxu0
  %880 = vdwg.mxu0
  %v881 = vmax.f32 %v803, 0.0
  %v882 = vmax.f32 %v808, 0.0
  %v883 = vmax.f32 %v813, 0.0
  %v884 = vmax.f32 %v818, 0.0
  %v885 = vmax.f32 %v823, 0.0
  %v886 = vmax.f32 %v828, 0.0
  %v887 = vmax.f32 %v833, 0.0
  %v888 = vmax.f32 %v838, 0.0
  %v889 = vmax.f32 %v843, 0.0
  %v890 = vmax.f32 %v848, 0.0
  %v891 = vmax.f32 %v853, 0.0
  %v892 = vmax.f32 %v858, 0.0
  %v893 = vmax.f32 %v863, 0.0
  %v894 = vmax.f32 %v868, 0.0
  %v895 = vmax.f32 %v873, 0.0
  %v896 = vmax.f32 %v878, 0.0
  %897 = vmin.xlane.f32.xlu0 %v881
  %v898 = vpop.xlane.xlu0 %897
  %899 = vmin.xlane.f32.xlu0 %v882
  %v900 = vpop.xlane.xlu0 %899
  %901 = vmin.xlane.f32.xlu0 %v883
  %v902 = vpop.xlane.xlu0 %901
  %903 = vmin.xlane.f32.xlu0 %v884
  %v904 = vpop.xlane.xlu0 %903
  %905 = vmin.xlane.f32.xlu0 %v885
  %v906 = vpop.xlane.xlu0 %905
  %907 = vmin.xlane.f32.xlu0 %v886
  %v908 = vpop.xlane.xlu0 %907
  %909 = vmin.xlane.f32.xlu0 %v887
  %v910 = vpop.xlane.xlu0 %909
  %911 = vmin.xlane.f32.xlu0 %v888
  %v912 = vpop.xlane.xlu0 %911
  %913 = vmin.xlane.f32.xlu0 %v889
  %v914 = vpop.xlane.xlu0 %913
  %915 = vmin.xlane.f32.xlu0 %v890
  %v916 = vpop.xlane.xlu0 %915
  %917 = vmin.xlane.f32.xlu0 %v891
  %v918 = vpop.xlane.xlu0 %917
  %919 = vmin.xlane.f32.xlu0 %v892
  %v920 = vpop.xlane.xlu0 %919
  %921 = vmin.xlane.f32.xlu0 %v893
  %v922 = vpop.xlane.xlu0 %921
  %923 = vmin.xlane.f32.xlu0 %v894
  %v924 = vpop.xlane.xlu0 %923
  %925 = vmin.xlane.f32.xlu0 %v895
  %v926 = vpop.xlane.xlu0 %925
  %927 = vmin.xlane.f32.xlu0 %v896
  %v928 = vpop.xlane.xlu0 %927
  %vm929 = vcmp.eq.f32.partialorder %v881, %v898
  %vm930 = vcmp.eq.f32.partialorder %v882, %v900
  %vm931 = vcmp.eq.f32.partialorder %v883, %v902
  %vm932 = vcmp.eq.f32.partialorder %v884, %v904
  %vm933 = vcmp.eq.f32.partialorder %v885, %v906
  %vm934 = vcmp.eq.f32.partialorder %v886, %v908
  %vm935 = vcmp.eq.f32.partialorder %v887, %v910
  %vm936 = vcmp.eq.f32.partialorder %v888, %v912
  %vm937 = vcmp.eq.f32.partialorder %v889, %v914
  %vm938 = vcmp.eq.f32.partialorder %v890, %v916
  %vm939 = vcmp.eq.f32.partialorder %v891, %v918
  %vm940 = vcmp.eq.f32.partialorder %v892, %v920
  %vm941 = vcmp.eq.f32.partialorder %v893, %v922
  %vm942 = vcmp.eq.f32.partialorder %v894, %v924
  %vm943 = vcmp.eq.f32.partialorder %v895, %v926
  %vm944 = vcmp.eq.f32.partialorder %v896, %v928
  %v945 = vsel %vm929, %v451, inf
  %v946 = vsel %vm930, %v452, inf
  %v947 = vsel %vm931, %v453, inf
  %v948 = vsel %vm932, %v454, inf
  %v949 = vsel %vm933, %v455, inf
  %v950 = vsel %vm934, %v456, inf
  %v951 = vsel %vm935, %v457, inf
  %v952 = vsel %vm936, %v458, inf
  %v953 = vsel %vm937, %v459, inf
  %v954 = vsel %vm938, %v460, inf
  %v955 = vsel %vm939, %v461, inf
  %v956 = vsel %vm940, %v462, inf
  %v957 = vsel %vm941, %v463, inf
  %v958 = vsel %vm942, %v464, inf
  %v959 = vsel %vm943, %v465, inf
  %v960 = vsel %vm944, %v466, inf
  %961 = vmin.xlane.f32.xlu0 %v945
  %v962 = vpop.xlane.xlu0 %961
  %963 = vmin.xlane.f32.xlu0 %v946
  %v964 = vpop.xlane.xlu0 %963
  %965 = vmin.xlane.f32.xlu0 %v947
  %v966 = vpop.xlane.xlu0 %965
  %967 = vmin.xlane.f32.xlu0 %v948
  %v968 = vpop.xlane.xlu0 %967
  %969 = vmin.xlane.f32.xlu0 %v949
  %v970 = vpop.xlane.xlu0 %969
  %971 = vmin.xlane.f32.xlu0 %v950
  %v972 = vpop.xlane.xlu0 %971
  %973 = vmin.xlane.f32.xlu0 %v951
  %v974 = vpop.xlane.xlu0 %973
  %975 = vmin.xlane.f32.xlu0 %v952
  %v976 = vpop.xlane.xlu0 %975
  %977 = vmin.xlane.f32.xlu0 %v953
  %v978 = vpop.xlane.xlu0 %977
  %979 = vmin.xlane.f32.xlu0 %v954
  %v980 = vpop.xlane.xlu0 %979
  %981 = vmin.xlane.f32.xlu0 %v955
  %v982 = vpop.xlane.xlu0 %981
  %983 = vmin.xlane.f32.xlu0 %v956
  %v984 = vpop.xlane.xlu0 %983
  %985 = vmin.xlane.f32.xlu0 %v957
  %v986 = vpop.xlane.xlu0 %985
  %987 = vmin.xlane.f32.xlu0 %v958
  %v988 = vpop.xlane.xlu0 %987
  %989 = vmin.xlane.f32.xlu0 %v959
  %v990 = vpop.xlane.xlu0 %989
  %991 = vmin.xlane.f32.xlu0 %v960
  %v992 = vpop.xlane.xlu0 %991
  %v993 = vsel %vm499, 1, 0
  %v994 = vsel %vm500, 1, 0
  %v995 = vsel %vm501, 1, 0
  %v996 = vsel %vm502, 1, 0
  %v997 = vsel %vm503, 1, 0
  %v998 = vsel %vm504, 1, 0
  %v999 = vsel %vm505, 1, 0
  %v1000 = vsel %vm506, 1, 0
  %v1001 = vsel %vm507, 1, 0
  %v1002 = vsel %vm508, 1, 0
  %v1003 = vsel %vm509, 1, 0
  %v1004 = vsel %vm510, 1, 0
  %v1005 = vsel %vm511, 1, 0
  %v1006 = vsel %vm512, 1, 0
  %v1007 = vsel %vm513, 1, 0
  %v1008 = vsel %vm514, 1, 0
  %v1009 = vcvt.s32.f32 %v993
  %v1010 = vcvt.s32.f32 %v994
  %v1011 = vcvt.s32.f32 %v995
  %v1012 = vcvt.s32.f32 %v996
  %v1013 = vcvt.s32.f32 %v997
  %v1014 = vcvt.s32.f32 %v998
  %v1015 = vcvt.s32.f32 %v999
  %v1016 = vcvt.s32.f32 %v1000
  %v1017 = vcvt.s32.f32 %v1001
  %v1018 = vcvt.s32.f32 %v1002
  %v1019 = vcvt.s32.f32 %v1003
  %v1020 = vcvt.s32.f32 %v1004
  %v1021 = vcvt.s32.f32 %v1005
  %v1022 = vcvt.s32.f32 %v1006
  %v1023 = vcvt.s32.f32 %v1007
  %v1024 = vcvt.s32.f32 %v1008
  %v1025 = vadd.f32 %v1009, %v1010
  %v1026 = vadd.f32 %v1025, %v1011
  %v1027 = vadd.f32 %v1026, %v1012
  %v1028 = vadd.f32 %v1027, %v1013
  %v1029 = vadd.f32 %v1028, %v1014
  %v1030 = vadd.f32 %v1029, %v1015
  %v1031 = vadd.f32 %v1030, %v1016
  %v1032 = vadd.f32 %v1031, %v1017
  %v1033 = vadd.f32 %v1032, %v1018
  %v1034 = vadd.f32 %v1033, %v1019
  %v1035 = vadd.f32 %v1034, %v1020
  %v1036 = vadd.f32 %v1035, %v1021
  %v1037 = vadd.f32 %v1036, %v1022
  %v1038 = vadd.f32 %v1037, %v1023
  %v1039 = vadd.f32 %v1038, %v1024
  %v1040 = vrot.slane %v1039, 4
  %v1041 = vadd.f32 %v1039, %v1040
  %v1042 = vrot.slane %v1041, 2
  %v1043 = vadd.f32 %v1041, %v1042
  %v1044 = vrot.slane %v1043, 1
  %v1045 = vadd.f32 %v1043, %v1044
  %v1046 = vadd.f32 %v1045, 1e-12
  %vm1047 = vcmp.lt.f32.partialorder %v962, 0.00148225
  %vm1048 = vcmp.lt.f32.partialorder %v964, 0.00148225
  %vm1049 = vcmp.lt.f32.partialorder %v966, 0.00148225
  %vm1050 = vcmp.lt.f32.partialorder %v968, 0.00148225
  %vm1051 = vcmp.lt.f32.partialorder %v970, 0.00148225
  %vm1052 = vcmp.lt.f32.partialorder %v972, 0.00148225
  %vm1053 = vcmp.lt.f32.partialorder %v974, 0.00148225
  %vm1054 = vcmp.lt.f32.partialorder %v976, 0.00148225
  %vm1055 = vcmp.lt.f32.partialorder %v978, 0.00148225
  %vm1056 = vcmp.lt.f32.partialorder %v980, 0.00148225
  %vm1057 = vcmp.lt.f32.partialorder %v982, 0.00148225
  %vm1058 = vcmp.lt.f32.partialorder %v984, 0.00148225
  %vm1059 = vcmp.lt.f32.partialorder %v986, 0.00148225
  %vm1060 = vcmp.lt.f32.partialorder %v988, 0.00148225
  %vm1061 = vcmp.lt.f32.partialorder %v990, 0.00148225
  %vm1062 = vcmp.lt.f32.partialorder %v992, 0.00148225
  %vm1063 = vmand %vm499, %vm1047
  %vm1064 = vmand %vm500, %vm1048
  %vm1065 = vmand %vm501, %vm1049
  %vm1066 = vmand %vm502, %vm1050
  %vm1067 = vmand %vm503, %vm1051
  %vm1068 = vmand %vm504, %vm1052
  %vm1069 = vmand %vm505, %vm1053
  %vm1070 = vmand %vm506, %vm1054
  %vm1071 = vmand %vm507, %vm1055
  %vm1072 = vmand %vm508, %vm1056
  %vm1073 = vmand %vm509, %vm1057
  %vm1074 = vmand %vm510, %vm1058
  %vm1075 = vmand %vm511, %vm1059
  %vm1076 = vmand %vm512, %vm1060
  %vm1077 = vmand %vm513, %vm1061
  %vm1078 = vmand %vm514, %vm1062
  %v1079 = vsel %vm1063, 1.0, 0.0
  %v1080 = vsel %vm1064, 1.0, 0.0
  %v1081 = vsel %vm1065, 1.0, 0.0
  %v1082 = vsel %vm1066, 1.0, 0.0
  %v1083 = vsel %vm1067, 1.0, 0.0
  %v1084 = vsel %vm1068, 1.0, 0.0
  %v1085 = vsel %vm1069, 1.0, 0.0
  %v1086 = vsel %vm1070, 1.0, 0.0
  %v1087 = vsel %vm1071, 1.0, 0.0
  %v1088 = vsel %vm1072, 1.0, 0.0
  %v1089 = vsel %vm1073, 1.0, 0.0
  %v1090 = vsel %vm1074, 1.0, 0.0
  %v1091 = vsel %vm1075, 1.0, 0.0
  %v1092 = vsel %vm1076, 1.0, 0.0
  %v1093 = vsel %vm1077, 1.0, 0.0
  %v1094 = vsel %vm1078, 1.0, 0.0
  %v1095 = vadd.f32 %v1079, %v1080
  %v1096 = vadd.f32 %v1095, %v1081
  %v1097 = vadd.f32 %v1096, %v1082
  %v1098 = vadd.f32 %v1097, %v1083
  %v1099 = vadd.f32 %v1098, %v1084
  %v1100 = vadd.f32 %v1099, %v1085
  %v1101 = vadd.f32 %v1100, %v1086
  %v1102 = vadd.f32 %v1101, %v1087
  %v1103 = vadd.f32 %v1102, %v1088
  %v1104 = vadd.f32 %v1103, %v1089
  %v1105 = vadd.f32 %v1104, %v1090
  %v1106 = vadd.f32 %v1105, %v1091
  %v1107 = vadd.f32 %v1106, %v1092
  %v1108 = vadd.f32 %v1107, %v1093
  %v1109 = vadd.f32 %v1108, %v1094
  %v1110 = vrot.slane %v1109, 4
  %v1111 = vadd.f32 %v1109, %v1110
  %v1112 = vrot.slane %v1111, 2
  %v1113 = vadd.f32 %v1111, %v1112
  %v1114 = vrot.slane %v1113, 1
  %v1115 = vadd.f32 %v1113, %v1114
  %v1116 = vrcp.pop %v1046
  %v1117 = vmul.f32 %v1115, %v1116
  %v1118 = vrsqrt.pop %v881
  %v1119 = vmul.f32 %v881, %v1118
  %vm1120 = vcmp.eq.f32.partialorder %v881, inf
  %v1121 = vsel %vm1120, %v881, %v1119
  %vm1122 = vcmp.eq.f32.partialorder %v881, 0.0
  %v1123 = vand.u32 %v881, 2147483648
  %v1124 = vsel %vm1122, %v1123, %v1121
  %v1125 = vrsqrt.pop %v882
  %v1126 = vmul.f32 %v882, %v1125
  %vm1127 = vcmp.eq.f32.partialorder %v882, inf
  %v1128 = vsel %vm1127, %v882, %v1126
  %vm1129 = vcmp.eq.f32.partialorder %v882, 0.0
  %v1130 = vand.u32 %v882, 2147483648
  %v1131 = vsel %vm1129, %v1130, %v1128
  %v1132 = vrsqrt.pop %v883
  %v1133 = vmul.f32 %v883, %v1132
  %vm1134 = vcmp.eq.f32.partialorder %v883, inf
  %v1135 = vsel %vm1134, %v883, %v1133
  %vm1136 = vcmp.eq.f32.partialorder %v883, 0.0
  %v1137 = vand.u32 %v883, 2147483648
  %v1138 = vsel %vm1136, %v1137, %v1135
  %v1139 = vrsqrt.pop %v884
  %v1140 = vmul.f32 %v884, %v1139
  %vm1141 = vcmp.eq.f32.partialorder %v884, inf
  %v1142 = vsel %vm1141, %v884, %v1140
  %vm1143 = vcmp.eq.f32.partialorder %v884, 0.0
  %v1144 = vand.u32 %v884, 2147483648
  %v1145 = vsel %vm1143, %v1144, %v1142
  %v1146 = vrsqrt.pop %v885
  %v1147 = vmul.f32 %v885, %v1146
  %vm1148 = vcmp.eq.f32.partialorder %v885, inf
  %v1149 = vsel %vm1148, %v885, %v1147
  %vm1150 = vcmp.eq.f32.partialorder %v885, 0.0
  %v1151 = vand.u32 %v885, 2147483648
  %v1152 = vsel %vm1150, %v1151, %v1149
  %v1153 = vrsqrt.pop %v886
  %v1154 = vmul.f32 %v886, %v1153
  %vm1155 = vcmp.eq.f32.partialorder %v886, inf
  %v1156 = vsel %vm1155, %v886, %v1154
  %vm1157 = vcmp.eq.f32.partialorder %v886, 0.0
  %v1158 = vand.u32 %v886, 2147483648
  %v1159 = vsel %vm1157, %v1158, %v1156
  %v1160 = vrsqrt.pop %v887
  %v1161 = vmul.f32 %v887, %v1160
  %vm1162 = vcmp.eq.f32.partialorder %v887, inf
  %v1163 = vsel %vm1162, %v887, %v1161
  %vm1164 = vcmp.eq.f32.partialorder %v887, 0.0
  %v1165 = vand.u32 %v887, 2147483648
  %v1166 = vsel %vm1164, %v1165, %v1163
  %v1167 = vrsqrt.pop %v888
  %v1168 = vmul.f32 %v888, %v1167
  %vm1169 = vcmp.eq.f32.partialorder %v888, inf
  %v1170 = vsel %vm1169, %v888, %v1168
  %vm1171 = vcmp.eq.f32.partialorder %v888, 0.0
  %v1172 = vand.u32 %v888, 2147483648
  %v1173 = vsel %vm1171, %v1172, %v1170
  %v1174 = vrsqrt.pop %v889
  %v1175 = vmul.f32 %v889, %v1174
  %vm1176 = vcmp.eq.f32.partialorder %v889, inf
  %v1177 = vsel %vm1176, %v889, %v1175
  %vm1178 = vcmp.eq.f32.partialorder %v889, 0.0
  %v1179 = vand.u32 %v889, 2147483648
  %v1180 = vsel %vm1178, %v1179, %v1177
  %v1181 = vrsqrt.pop %v890
  %v1182 = vmul.f32 %v890, %v1181
  %vm1183 = vcmp.eq.f32.partialorder %v890, inf
  %v1184 = vsel %vm1183, %v890, %v1182
  %vm1185 = vcmp.eq.f32.partialorder %v890, 0.0
  %v1186 = vand.u32 %v890, 2147483648
  %v1187 = vsel %vm1185, %v1186, %v1184
  %v1188 = vrsqrt.pop %v891
  %v1189 = vmul.f32 %v891, %v1188
  %vm1190 = vcmp.eq.f32.partialorder %v891, inf
  %v1191 = vsel %vm1190, %v891, %v1189
  %vm1192 = vcmp.eq.f32.partialorder %v891, 0.0
  %v1193 = vand.u32 %v891, 2147483648
  %v1194 = vsel %vm1192, %v1193, %v1191
  %v1195 = vrsqrt.pop %v892
  %v1196 = vmul.f32 %v892, %v1195
  %vm1197 = vcmp.eq.f32.partialorder %v892, inf
  %v1198 = vsel %vm1197, %v892, %v1196
  %vm1199 = vcmp.eq.f32.partialorder %v892, 0.0
  %v1200 = vand.u32 %v892, 2147483648
  %v1201 = vsel %vm1199, %v1200, %v1198
  %v1202 = vrsqrt.pop %v893
  %v1203 = vmul.f32 %v893, %v1202
  %vm1204 = vcmp.eq.f32.partialorder %v893, inf
  %v1205 = vsel %vm1204, %v893, %v1203
  %vm1206 = vcmp.eq.f32.partialorder %v893, 0.0
  %v1207 = vand.u32 %v893, 2147483648
  %v1208 = vsel %vm1206, %v1207, %v1205
  %v1209 = vrsqrt.pop %v894
  %v1210 = vmul.f32 %v894, %v1209
  %vm1211 = vcmp.eq.f32.partialorder %v894, inf
  %v1212 = vsel %vm1211, %v894, %v1210
  %vm1213 = vcmp.eq.f32.partialorder %v894, 0.0
  %v1214 = vand.u32 %v894, 2147483648
  %v1215 = vsel %vm1213, %v1214, %v1212
  %v1216 = vrsqrt.pop %v895
  %v1217 = vmul.f32 %v895, %v1216
  %vm1218 = vcmp.eq.f32.partialorder %v895, inf
  %v1219 = vsel %vm1218, %v895, %v1217
  %vm1220 = vcmp.eq.f32.partialorder %v895, 0.0
  %v1221 = vand.u32 %v895, 2147483648
  %v1222 = vsel %vm1220, %v1221, %v1219
  %v1223 = vrsqrt.pop %v896
  %v1224 = vmul.f32 %v896, %v1223
  %vm1225 = vcmp.eq.f32.partialorder %v896, inf
  %v1226 = vsel %vm1225, %v896, %v1224
  %vm1227 = vcmp.eq.f32.partialorder %v896, 0.0
  %v1228 = vand.u32 %v896, 2147483648
  %v1229 = vsel %vm1227, %v1228, %v1226
  %vm1230 = vcmp.lt.f32.partialorder %v451, 0.00148225
  %vm1231 = vcmp.lt.f32.partialorder %v452, 0.00148225
  %vm1232 = vcmp.lt.f32.partialorder %v453, 0.00148225
  %vm1233 = vcmp.lt.f32.partialorder %v454, 0.00148225
  %vm1234 = vcmp.lt.f32.partialorder %v455, 0.00148225
  %vm1235 = vcmp.lt.f32.partialorder %v456, 0.00148225
  %vm1236 = vcmp.lt.f32.partialorder %v457, 0.00148225
  %vm1237 = vcmp.lt.f32.partialorder %v458, 0.00148225
  %vm1238 = vcmp.lt.f32.partialorder %v459, 0.00148225
  %vm1239 = vcmp.lt.f32.partialorder %v460, 0.00148225
  %vm1240 = vcmp.lt.f32.partialorder %v461, 0.00148225
  %vm1241 = vcmp.lt.f32.partialorder %v462, 0.00148225
  %vm1242 = vcmp.lt.f32.partialorder %v463, 0.00148225
  %vm1243 = vcmp.lt.f32.partialorder %v464, 0.00148225
  %vm1244 = vcmp.lt.f32.partialorder %v465, 0.00148225
  %vm1245 = vcmp.lt.f32.partialorder %v466, 0.00148225
  %v1246 = vsub.f32 %v1124, 0.1
  %v1247 = vsub.f32 %v1131, 0.1
  %v1248 = vsub.f32 %v1138, 0.1
  %v1249 = vsub.f32 %v1145, 0.1
  %v1250 = vsub.f32 %v1152, 0.1
  %v1251 = vsub.f32 %v1159, 0.1
  %v1252 = vsub.f32 %v1166, 0.1
  %v1253 = vsub.f32 %v1173, 0.1
  %v1254 = vsub.f32 %v1180, 0.1
  %v1255 = vsub.f32 %v1187, 0.1
  %v1256 = vsub.f32 %v1194, 0.1
  %v1257 = vsub.f32 %v1201, 0.1
  %v1258 = vsub.f32 %v1208, 0.1
  %v1259 = vsub.f32 %v1215, 0.1
  %v1260 = vsub.f32 %v1222, 0.1
  %v1261 = vsub.f32 %v1229, 0.1
  %v1262 = vmax.f32 %v1246, 0.0
  %v1263 = vmax.f32 %v1247, 0.0
  %v1264 = vmax.f32 %v1248, 0.0
  %v1265 = vmax.f32 %v1249, 0.0
  %v1266 = vmax.f32 %v1250, 0.0
  %v1267 = vmax.f32 %v1251, 0.0
  %v1268 = vmax.f32 %v1252, 0.0
  %v1269 = vmax.f32 %v1253, 0.0
  %v1270 = vmax.f32 %v1254, 0.0
  %v1271 = vmax.f32 %v1255, 0.0
  %v1272 = vmax.f32 %v1256, 0.0
  %v1273 = vmax.f32 %v1257, 0.0
  %v1274 = vmax.f32 %v1258, 0.0
  %v1275 = vmax.f32 %v1259, 0.0
  %v1276 = vmax.f32 %v1260, 0.0
  %v1277 = vmax.f32 %v1261, 0.0
  %v1278 = vsel %vm1230, %v1262, 0.0
  %v1279 = vsel %vm1231, %v1263, 0.0
  %v1280 = vsel %vm1232, %v1264, 0.0
  %v1281 = vsel %vm1233, %v1265, 0.0
  %v1282 = vsel %vm1234, %v1266, 0.0
  %v1283 = vsel %vm1235, %v1267, 0.0
  %v1284 = vsel %vm1236, %v1268, 0.0
  %v1285 = vsel %vm1237, %v1269, 0.0
  %v1286 = vsel %vm1238, %v1270, 0.0
  %v1287 = vsel %vm1239, %v1271, 0.0
  %v1288 = vsel %vm1240, %v1272, 0.0
  %v1289 = vsel %vm1241, %v1273, 0.0
  %v1290 = vsel %vm1242, %v1274, 0.0
  %v1291 = vsel %vm1243, %v1275, 0.0
  %v1292 = vsel %vm1244, %v1276, 0.0
  %v1293 = vsel %vm1245, %v1277, 0.0
  %v1294 = vmul.f32 %v1246, 10.0
  %v1295 = vmul.f32 %v1247, 10.0
  %v1296 = vmul.f32 %v1248, 10.0
  %v1297 = vmul.f32 %v1249, 10.0
  %v1298 = vmul.f32 %v1250, 10.0
  %v1299 = vmul.f32 %v1251, 10.0
  %v1300 = vmul.f32 %v1252, 10.0
  %v1301 = vmul.f32 %v1253, 10.0
  %v1302 = vmul.f32 %v1254, 10.0
  %v1303 = vmul.f32 %v1255, 10.0
  %v1304 = vmul.f32 %v1256, 10.0
  %v1305 = vmul.f32 %v1257, 10.0
  %v1306 = vmul.f32 %v1258, 10.0
  %v1307 = vmul.f32 %v1259, 10.0
  %v1308 = vmul.f32 %v1260, 10.0
  %v1309 = vmul.f32 %v1261, 10.0
  %v1310 = vmul.f32 %v1294, %v1278
  %v1311 = vmul.f32 %v1295, %v1279
  %v1312 = vmul.f32 %v1296, %v1280
  %v1313 = vmul.f32 %v1297, %v1281
  %v1314 = vmul.f32 %v1298, %v1282
  %v1315 = vmul.f32 %v1299, %v1283
  %v1316 = vmul.f32 %v1300, %v1284
  %v1317 = vmul.f32 %v1301, %v1285
  %v1318 = vmul.f32 %v1302, %v1286
  %v1319 = vmul.f32 %v1303, %v1287
  %v1320 = vmul.f32 %v1304, %v1288
  %v1321 = vmul.f32 %v1305, %v1289
  %v1322 = vmul.f32 %v1306, %v1290
  %v1323 = vmul.f32 %v1307, %v1291
  %v1324 = vmul.f32 %v1308, %v1292
  %v1325 = vmul.f32 %v1309, %v1293
  %v1326 = vmul.f32 %v1310, 1.442695
  %v1327 = vpow.pop %v1326
  %v1328 = vmul.f32 %v1311, 1.442695
  %v1329 = vpow.pop %v1328
  %v1330 = vmul.f32 %v1312, 1.442695
  %v1331 = vpow.pop %v1330
  %v1332 = vmul.f32 %v1313, 1.442695
  %v1333 = vpow.pop %v1332
  %v1334 = vmul.f32 %v1314, 1.442695
  %v1335 = vpow.pop %v1334
  %v1336 = vmul.f32 %v1315, 1.442695
  %v1337 = vpow.pop %v1336
  %v1338 = vmul.f32 %v1316, 1.442695
  %v1339 = vpow.pop %v1338
  %v1340 = vmul.f32 %v1317, 1.442695
  %v1341 = vpow.pop %v1340
  %v1342 = vmul.f32 %v1318, 1.442695
  %v1343 = vpow.pop %v1342
  %v1344 = vmul.f32 %v1319, 1.442695
  %v1345 = vpow.pop %v1344
  %v1346 = vmul.f32 %v1320, 1.442695
  %v1347 = vpow.pop %v1346
  %v1348 = vmul.f32 %v1321, 1.442695
  %v1349 = vpow.pop %v1348
  %v1350 = vmul.f32 %v1322, 1.442695
  %v1351 = vpow.pop %v1350
  %v1352 = vmul.f32 %v1323, 1.442695
  %v1353 = vpow.pop %v1352
  %v1354 = vmul.f32 %v1324, 1.442695
  %v1355 = vpow.pop %v1354
  %v1356 = vmul.f32 %v1325, 1.442695
  %v1357 = vpow.pop %v1356
  %1358 = vadd.xlane.f32.xlu0 %v1327
  %v1359 = vpop.xlane.xlu0 %1358
  %1360 = vadd.xlane.f32.xlu0 %v1329
  %v1361 = vpop.xlane.xlu0 %1360
  %1362 = vadd.xlane.f32.xlu0 %v1331
  %v1363 = vpop.xlane.xlu0 %1362
  %1364 = vadd.xlane.f32.xlu0 %v1333
  %v1365 = vpop.xlane.xlu0 %1364
  %1366 = vadd.xlane.f32.xlu0 %v1335
  %v1367 = vpop.xlane.xlu0 %1366
  %1368 = vadd.xlane.f32.xlu0 %v1337
  %v1369 = vpop.xlane.xlu0 %1368
  %1370 = vadd.xlane.f32.xlu0 %v1339
  %v1371 = vpop.xlane.xlu0 %1370
  %1372 = vadd.xlane.f32.xlu0 %v1341
  %v1373 = vpop.xlane.xlu0 %1372
  %1374 = vadd.xlane.f32.xlu0 %v1343
  %v1375 = vpop.xlane.xlu0 %1374
  %1376 = vadd.xlane.f32.xlu0 %v1345
  %v1377 = vpop.xlane.xlu0 %1376
  %1378 = vadd.xlane.f32.xlu0 %v1347
  %v1379 = vpop.xlane.xlu0 %1378
  %1380 = vadd.xlane.f32.xlu0 %v1349
  %v1381 = vpop.xlane.xlu0 %1380
  %1382 = vadd.xlane.f32.xlu0 %v1351
  %v1383 = vpop.xlane.xlu0 %1382
  %1384 = vadd.xlane.f32.xlu0 %v1353
  %v1385 = vpop.xlane.xlu0 %1384
  %1386 = vadd.xlane.f32.xlu0 %v1355
  %v1387 = vpop.xlane.xlu0 %1386
  %1388 = vadd.xlane.f32.xlu0 %v1357
  %v1389 = vpop.xlane.xlu0 %1388
  %v1390 = vlog2.pop %v1359
  %v1391 = vmul.f32 %v1390, 0.6931472
  %v1392 = vlog2.pop %v1361
  %v1393 = vmul.f32 %v1392, 0.6931472
  %v1394 = vlog2.pop %v1363
  %v1395 = vmul.f32 %v1394, 0.6931472
  %v1396 = vlog2.pop %v1365
  %v1397 = vmul.f32 %v1396, 0.6931472
  %v1398 = vlog2.pop %v1367
  %v1399 = vmul.f32 %v1398, 0.6931472
  %v1400 = vlog2.pop %v1369
  %v1401 = vmul.f32 %v1400, 0.6931472
  %v1402 = vlog2.pop %v1371
  %v1403 = vmul.f32 %v1402, 0.6931472
  %v1404 = vlog2.pop %v1373
  %v1405 = vmul.f32 %v1404, 0.6931472
  %v1406 = vlog2.pop %v1375
  %v1407 = vmul.f32 %v1406, 0.6931472
  %v1408 = vlog2.pop %v1377
  %v1409 = vmul.f32 %v1408, 0.6931472
  %v1410 = vlog2.pop %v1379
  %v1411 = vmul.f32 %v1410, 0.6931472
  %v1412 = vlog2.pop %v1381
  %v1413 = vmul.f32 %v1412, 0.6931472
  %v1414 = vlog2.pop %v1383
  %v1415 = vmul.f32 %v1414, 0.6931472
  %v1416 = vlog2.pop %v1385
  %v1417 = vmul.f32 %v1416, 0.6931472
  %v1418 = vlog2.pop %v1387
  %v1419 = vmul.f32 %v1418, 0.6931472
  %v1420 = vlog2.pop %v1389
  %v1421 = vmul.f32 %v1420, 0.6931472
  %v1422 = vadd.f32 %v1327, %v1329
  %v1423 = vadd.f32 %v1422, %v1331
  %v1424 = vadd.f32 %v1423, %v1333
  %v1425 = vadd.f32 %v1424, %v1335
  %v1426 = vadd.f32 %v1425, %v1337
  %v1427 = vadd.f32 %v1426, %v1339
  %v1428 = vadd.f32 %v1427, %v1341
  %v1429 = vadd.f32 %v1428, %v1343
  %v1430 = vadd.f32 %v1429, %v1345
  %v1431 = vadd.f32 %v1430, %v1347
  %v1432 = vadd.f32 %v1431, %v1349
  %v1433 = vadd.f32 %v1432, %v1351
  %v1434 = vadd.f32 %v1433, %v1353
  %v1435 = vadd.f32 %v1434, %v1355
  %v1436 = vadd.f32 %v1435, %v1357
  %v1437 = vrot.slane %v1436, 4
  %v1438 = vadd.f32 %v1436, %v1437
  %v1439 = vrot.slane %v1438, 2
  %v1440 = vadd.f32 %v1438, %v1439
  %v1441 = vrot.slane %v1440, 1
  %v1442 = vadd.f32 %v1440, %v1441
  %v1443 = vlog2.pop %v1442
  %v1444 = vmul.f32 %v1443, 0.6931472
  %vm1445 = vcmp.gt.f32.partialorder %v451, 0.01
  %vm1446 = vcmp.gt.f32.partialorder %v452, 0.01
  %vm1447 = vcmp.gt.f32.partialorder %v453, 0.01
  %vm1448 = vcmp.gt.f32.partialorder %v454, 0.01
  %vm1449 = vcmp.gt.f32.partialorder %v455, 0.01
  %vm1450 = vcmp.gt.f32.partialorder %v456, 0.01
  %vm1451 = vcmp.gt.f32.partialorder %v457, 0.01
  %vm1452 = vcmp.gt.f32.partialorder %v458, 0.01
  %vm1453 = vcmp.gt.f32.partialorder %v459, 0.01
  %vm1454 = vcmp.gt.f32.partialorder %v460, 0.01
  %vm1455 = vcmp.gt.f32.partialorder %v461, 0.01
  %vm1456 = vcmp.gt.f32.partialorder %v462, 0.01
  %vm1457 = vcmp.gt.f32.partialorder %v463, 0.01
  %vm1458 = vcmp.gt.f32.partialorder %v464, 0.01
  %vm1459 = vcmp.gt.f32.partialorder %v465, 0.01
  %vm1460 = vcmp.gt.f32.partialorder %v466, 0.01
  %v1461 = vsub.f32 1.4, %v1124
  %v1462 = vsub.f32 1.4, %v1131
  %v1463 = vsub.f32 1.4, %v1138
  %v1464 = vsub.f32 1.4, %v1145
  %v1465 = vsub.f32 1.4, %v1152
  %v1466 = vsub.f32 1.4, %v1159
  %v1467 = vsub.f32 1.4, %v1166
  %v1468 = vsub.f32 1.4, %v1173
  %v1469 = vsub.f32 1.4, %v1180
  %v1470 = vsub.f32 1.4, %v1187
  %v1471 = vsub.f32 1.4, %v1194
  %v1472 = vsub.f32 1.4, %v1201
  %v1473 = vsub.f32 1.4, %v1208
  %v1474 = vsub.f32 1.4, %v1215
  %v1475 = vsub.f32 1.4, %v1222
  %v1476 = vsub.f32 1.4, %v1229
  %v1477 = vmax.f32 %v1461, 0.0
  %v1478 = vmax.f32 %v1462, 0.0
  %v1479 = vmax.f32 %v1463, 0.0
  %v1480 = vmax.f32 %v1464, 0.0
  %v1481 = vmax.f32 %v1465, 0.0
  %v1482 = vmax.f32 %v1466, 0.0
  %v1483 = vmax.f32 %v1467, 0.0
  %v1484 = vmax.f32 %v1468, 0.0
  %v1485 = vmax.f32 %v1469, 0.0
  %v1486 = vmax.f32 %v1470, 0.0
  %v1487 = vmax.f32 %v1471, 0.0
  %v1488 = vmax.f32 %v1472, 0.0
  %v1489 = vmax.f32 %v1473, 0.0
  %v1490 = vmax.f32 %v1474, 0.0
  %v1491 = vmax.f32 %v1475, 0.0
  %v1492 = vmax.f32 %v1476, 0.0
  %v1493 = vsel %vm1445, %v1477, 0.0
  %v1494 = vsel %vm1446, %v1478, 0.0
  %v1495 = vsel %vm1447, %v1479, 0.0
  %v1496 = vsel %vm1448, %v1480, 0.0
  %v1497 = vsel %vm1449, %v1481, 0.0
  %v1498 = vsel %vm1450, %v1482, 0.0
  %v1499 = vsel %vm1451, %v1483, 0.0
  %v1500 = vsel %vm1452, %v1484, 0.0
  %v1501 = vsel %vm1453, %v1485, 0.0
  %v1502 = vsel %vm1454, %v1486, 0.0
  %v1503 = vsel %vm1455, %v1487, 0.0
  %v1504 = vsel %vm1456, %v1488, 0.0
  %v1505 = vsel %vm1457, %v1489, 0.0
  %v1506 = vsel %vm1458, %v1490, 0.0
  %v1507 = vsel %vm1459, %v1491, 0.0
  %v1508 = vsel %vm1460, %v1492, 0.0
  %v1509 = vmul.f32 %v1461, 10.0
  %v1510 = vmul.f32 %v1462, 10.0
  %v1511 = vmul.f32 %v1463, 10.0
  %v1512 = vmul.f32 %v1464, 10.0
  %v1513 = vmul.f32 %v1465, 10.0
  %v1514 = vmul.f32 %v1466, 10.0
  %v1515 = vmul.f32 %v1467, 10.0
  %v1516 = vmul.f32 %v1468, 10.0
  %v1517 = vmul.f32 %v1469, 10.0
  %v1518 = vmul.f32 %v1470, 10.0
  %v1519 = vmul.f32 %v1471, 10.0
  %v1520 = vmul.f32 %v1472, 10.0
  %v1521 = vmul.f32 %v1473, 10.0
  %v1522 = vmul.f32 %v1474, 10.0
  %v1523 = vmul.f32 %v1475, 10.0
  %v1524 = vmul.f32 %v1476, 10.0
  %v1525 = vmul.f32 %v1509, %v1493
  %v1526 = vmul.f32 %v1510, %v1494
  %v1527 = vmul.f32 %v1511, %v1495
  %v1528 = vmul.f32 %v1512, %v1496
  %v1529 = vmul.f32 %v1513, %v1497
  %v1530 = vmul.f32 %v1514, %v1498
  %v1531 = vmul.f32 %v1515, %v1499
  %v1532 = vmul.f32 %v1516, %v1500
  %v1533 = vmul.f32 %v1517, %v1501
  %v1534 = vmul.f32 %v1518, %v1502
  %v1535 = vmul.f32 %v1519, %v1503
  %v1536 = vmul.f32 %v1520, %v1504
  %v1537 = vmul.f32 %v1521, %v1505
  %v1538 = vmul.f32 %v1522, %v1506
  %v1539 = vmul.f32 %v1523, %v1507
  %v1540 = vmul.f32 %v1524, %v1508
  %v1541 = vmul.f32 %v1525, 1.442695
  %v1542 = vpow.pop %v1541
  %v1543 = vmul.f32 %v1526, 1.442695
  %v1544 = vpow.pop %v1543
  %v1545 = vmul.f32 %v1527, 1.442695
  %v1546 = vpow.pop %v1545
  %v1547 = vmul.f32 %v1528, 1.442695
  %v1548 = vpow.pop %v1547
  %v1549 = vmul.f32 %v1529, 1.442695
  %v1550 = vpow.pop %v1549
  %v1551 = vmul.f32 %v1530, 1.442695
  %v1552 = vpow.pop %v1551
  %v1553 = vmul.f32 %v1531, 1.442695
  %v1554 = vpow.pop %v1553
  %v1555 = vmul.f32 %v1532, 1.442695
  %v1556 = vpow.pop %v1555
  %v1557 = vmul.f32 %v1533, 1.442695
  %v1558 = vpow.pop %v1557
  %v1559 = vmul.f32 %v1534, 1.442695
  %v1560 = vpow.pop %v1559
  %v1561 = vmul.f32 %v1535, 1.442695
  %v1562 = vpow.pop %v1561
  %v1563 = vmul.f32 %v1536, 1.442695
  %v1564 = vpow.pop %v1563
  %v1565 = vmul.f32 %v1537, 1.442695
  %v1566 = vpow.pop %v1565
  %v1567 = vmul.f32 %v1538, 1.442695
  %v1568 = vpow.pop %v1567
  %v1569 = vmul.f32 %v1539, 1.442695
  %v1570 = vpow.pop %v1569
  %v1571 = vmul.f32 %v1540, 1.442695
  %v1572 = vpow.pop %v1571
  %1573 = vadd.xlane.f32.xlu0 %v1542
  %v1574 = vpop.xlane.xlu0 %1573
  %1575 = vadd.xlane.f32.xlu0 %v1544
  %v1576 = vpop.xlane.xlu0 %1575
  %1577 = vadd.xlane.f32.xlu0 %v1546
  %v1578 = vpop.xlane.xlu0 %1577
  %1579 = vadd.xlane.f32.xlu0 %v1548
  %v1580 = vpop.xlane.xlu0 %1579
  %1581 = vadd.xlane.f32.xlu0 %v1550
  %v1582 = vpop.xlane.xlu0 %1581
  %1583 = vadd.xlane.f32.xlu0 %v1552
  %v1584 = vpop.xlane.xlu0 %1583
  %1585 = vadd.xlane.f32.xlu0 %v1554
  %v1586 = vpop.xlane.xlu0 %1585
  %1587 = vadd.xlane.f32.xlu0 %v1556
  %v1588 = vpop.xlane.xlu0 %1587
  %1589 = vadd.xlane.f32.xlu0 %v1558
  %v1590 = vpop.xlane.xlu0 %1589
  %1591 = vadd.xlane.f32.xlu0 %v1560
  %v1592 = vpop.xlane.xlu0 %1591
  %1593 = vadd.xlane.f32.xlu0 %v1562
  %v1594 = vpop.xlane.xlu0 %1593
  %1595 = vadd.xlane.f32.xlu0 %v1564
  %v1596 = vpop.xlane.xlu0 %1595
  %1597 = vadd.xlane.f32.xlu0 %v1566
  %v1598 = vpop.xlane.xlu0 %1597
  %1599 = vadd.xlane.f32.xlu0 %v1568
  %v1600 = vpop.xlane.xlu0 %1599
  %1601 = vadd.xlane.f32.xlu0 %v1570
  %v1602 = vpop.xlane.xlu0 %1601
  %1603 = vadd.xlane.f32.xlu0 %v1572
  %v1604 = vpop.xlane.xlu0 %1603
  %v1605 = vlog2.pop %v1574
  %v1606 = vmul.f32 %v1605, 0.6931472
  %v1607 = vlog2.pop %v1576
  %v1608 = vmul.f32 %v1607, 0.6931472
  %v1609 = vlog2.pop %v1578
  %v1610 = vmul.f32 %v1609, 0.6931472
  %v1611 = vlog2.pop %v1580
  %v1612 = vmul.f32 %v1611, 0.6931472
  %v1613 = vlog2.pop %v1582
  %v1614 = vmul.f32 %v1613, 0.6931472
  %v1615 = vlog2.pop %v1584
  %v1616 = vmul.f32 %v1615, 0.6931472
  %v1617 = vlog2.pop %v1586
  %v1618 = vmul.f32 %v1617, 0.6931472
  %v1619 = vlog2.pop %v1588
  %v1620 = vmul.f32 %v1619, 0.6931472
  %v1621 = vlog2.pop %v1590
  %v1622 = vmul.f32 %v1621, 0.6931472
  %v1623 = vlog2.pop %v1592
  %v1624 = vmul.f32 %v1623, 0.6931472
  %v1625 = vlog2.pop %v1594
  %v1626 = vmul.f32 %v1625, 0.6931472
  %v1627 = vlog2.pop %v1596
  %v1628 = vmul.f32 %v1627, 0.6931472
  %v1629 = vlog2.pop %v1598
  %v1630 = vmul.f32 %v1629, 0.6931472
  %v1631 = vlog2.pop %v1600
  %v1632 = vmul.f32 %v1631, 0.6931472
  %v1633 = vlog2.pop %v1602
  %v1634 = vmul.f32 %v1633, 0.6931472
  %v1635 = vlog2.pop %v1604
  %v1636 = vmul.f32 %v1635, 0.6931472
  %v1637 = vadd.f32 %v1542, %v1544
  %v1638 = vadd.f32 %v1637, %v1546
  %v1639 = vadd.f32 %v1638, %v1548
  %v1640 = vadd.f32 %v1639, %v1550
  %v1641 = vadd.f32 %v1640, %v1552
  %v1642 = vadd.f32 %v1641, %v1554
  %v1643 = vadd.f32 %v1642, %v1556
  %v1644 = vadd.f32 %v1643, %v1558
  %v1645 = vadd.f32 %v1644, %v1560
  %v1646 = vadd.f32 %v1645, %v1562
  %v1647 = vadd.f32 %v1646, %v1564
  %v1648 = vadd.f32 %v1647, %v1566
  %v1649 = vadd.f32 %v1648, %v1568
  %v1650 = vadd.f32 %v1649, %v1570
  %v1651 = vadd.f32 %v1650, %v1572
  %v1652 = vrot.slane %v1651, 4
  %v1653 = vadd.f32 %v1651, %v1652
  %v1654 = vrot.slane %v1653, 2
  %v1655 = vadd.f32 %v1653, %v1654
  %v1656 = vrot.slane %v1655, 1
  %v1657 = vadd.f32 %v1655, %v1656
  %v1658 = vlog2.pop %v1657
  %v1659 = vmul.f32 %v1658, 0.6931472
  %v1660 = vadd.f32 %v1391, %v1606
  %v1661 = vadd.f32 %v1393, %v1608
  %v1662 = vadd.f32 %v1395, %v1610
  %v1663 = vadd.f32 %v1397, %v1612
  %v1664 = vadd.f32 %v1399, %v1614
  %v1665 = vadd.f32 %v1401, %v1616
  %v1666 = vadd.f32 %v1403, %v1618
  %v1667 = vadd.f32 %v1405, %v1620
  %v1668 = vadd.f32 %v1407, %v1622
  %v1669 = vadd.f32 %v1409, %v1624
  %v1670 = vadd.f32 %v1411, %v1626
  %v1671 = vadd.f32 %v1413, %v1628
  %v1672 = vadd.f32 %v1415, %v1630
  %v1673 = vadd.f32 %v1417, %v1632
  %v1674 = vadd.f32 %v1419, %v1634
  %v1675 = vadd.f32 %v1421, %v1636
  %v1676 = vmax.f32 %v1660, 0.0
  %v1677 = vmax.f32 %v1661, 0.0
  %v1678 = vmax.f32 %v1662, 0.0
  %v1679 = vmax.f32 %v1663, 0.0
  %v1680 = vmax.f32 %v1664, 0.0
  %v1681 = vmax.f32 %v1665, 0.0
  %v1682 = vmax.f32 %v1666, 0.0
  %v1683 = vmax.f32 %v1667, 0.0
  %v1684 = vmax.f32 %v1668, 0.0
  %v1685 = vmax.f32 %v1669, 0.0
  %v1686 = vmax.f32 %v1670, 0.0
  %v1687 = vmax.f32 %v1671, 0.0
  %v1688 = vmax.f32 %v1672, 0.0
  %v1689 = vmax.f32 %v1673, 0.0
  %v1690 = vmax.f32 %v1674, 0.0
  %v1691 = vmax.f32 %v1675, 0.0
  %v1692 = vand.u32 2147483647, %v1660
  %v1693 = vand.u32 2147483647, %v1661
  %v1694 = vand.u32 2147483647, %v1662
  %v1695 = vand.u32 2147483647, %v1663
  %v1696 = vand.u32 2147483647, %v1664
  %v1697 = vand.u32 2147483647, %v1665
  %v1698 = vand.u32 2147483647, %v1666
  %v1699 = vand.u32 2147483647, %v1667
  %v1700 = vand.u32 2147483647, %v1668
  %v1701 = vand.u32 2147483647, %v1669
  %v1702 = vand.u32 2147483647, %v1670
  %v1703 = vand.u32 2147483647, %v1671
  %v1704 = vand.u32 2147483647, %v1672
  %v1705 = vand.u32 2147483647, %v1673
  %v1706 = vand.u32 2147483647, %v1674
  %v1707 = vand.u32 2147483647, %v1675
  %v1708 = vsub.f32 0.0, %v1692
  %v1709 = vsub.f32 0.0, %v1693
  %v1710 = vsub.f32 0.0, %v1694
  %v1711 = vsub.f32 0.0, %v1695
  %v1712 = vsub.f32 0.0, %v1696
  %v1713 = vsub.f32 0.0, %v1697
  %v1714 = vsub.f32 0.0, %v1698
  %v1715 = vsub.f32 0.0, %v1699
  %v1716 = vsub.f32 0.0, %v1700
  %v1717 = vsub.f32 0.0, %v1701
  %v1718 = vsub.f32 0.0, %v1702
  %v1719 = vsub.f32 0.0, %v1703
  %v1720 = vsub.f32 0.0, %v1704
  %v1721 = vsub.f32 0.0, %v1705
  %v1722 = vsub.f32 0.0, %v1706
  %v1723 = vsub.f32 0.0, %v1707
  %v1724 = vmul.f32 %v1708, 1.442695
  %v1725 = vpow.pop %v1724
  %v1726 = vmul.f32 %v1709, 1.442695
  %v1727 = vpow.pop %v1726
  %v1728 = vmul.f32 %v1710, 1.442695
  %v1729 = vpow.pop %v1728
  %v1730 = vmul.f32 %v1711, 1.442695
  %v1731 = vpow.pop %v1730
  %v1732 = vmul.f32 %v1712, 1.442695
  %v1733 = vpow.pop %v1732
  %v1734 = vmul.f32 %v1713, 1.442695
  %v1735 = vpow.pop %v1734
  %v1736 = vmul.f32 %v1714, 1.442695
  %v1737 = vpow.pop %v1736
  %v1738 = vmul.f32 %v1715, 1.442695
  %v1739 = vpow.pop %v1738
  %v1740 = vmul.f32 %v1716, 1.442695
  %v1741 = vpow.pop %v1740
  %v1742 = vmul.f32 %v1717, 1.442695
  %v1743 = vpow.pop %v1742
  %v1744 = vmul.f32 %v1718, 1.442695
  %v1745 = vpow.pop %v1744
  %v1746 = vmul.f32 %v1719, 1.442695
  %v1747 = vpow.pop %v1746
  %v1748 = vmul.f32 %v1720, 1.442695
  %v1749 = vpow.pop %v1748
  %v1750 = vmul.f32 %v1721, 1.442695
  %v1751 = vpow.pop %v1750
  %v1752 = vmul.f32 %v1722, 1.442695
  %v1753 = vpow.pop %v1752
  %v1754 = vmul.f32 %v1723, 1.442695
  %v1755 = vpow.pop %v1754
  %v1756 = vadd.f32 %v1725, 1.0
  %v1757 = vadd.f32 %v1727, 1.0
  %v1758 = vadd.f32 %v1729, 1.0
  %v1759 = vadd.f32 %v1731, 1.0
  %v1760 = vadd.f32 %v1733, 1.0
  %v1761 = vadd.f32 %v1735, 1.0
  %v1762 = vadd.f32 %v1737, 1.0
  %v1763 = vadd.f32 %v1739, 1.0
  %v1764 = vadd.f32 %v1741, 1.0
  %v1765 = vadd.f32 %v1743, 1.0
  %v1766 = vadd.f32 %v1745, 1.0
  %v1767 = vadd.f32 %v1747, 1.0
  %v1768 = vadd.f32 %v1749, 1.0
  %v1769 = vadd.f32 %v1751, 1.0
  %v1770 = vadd.f32 %v1753, 1.0
  %v1771 = vadd.f32 %v1755, 1.0
  %v1772 = vlog2.pop %v1756
  %v1773 = vmul.f32 %v1772, 0.6931472
  %v1774 = vlog2.pop %v1757
  %v1775 = vmul.f32 %v1774, 0.6931472
  %v1776 = vlog2.pop %v1758
  %v1777 = vmul.f32 %v1776, 0.6931472
  %v1778 = vlog2.pop %v1759
  %v1779 = vmul.f32 %v1778, 0.6931472
  %v1780 = vlog2.pop %v1760
  %v1781 = vmul.f32 %v1780, 0.6931472
  %v1782 = vlog2.pop %v1761
  %v1783 = vmul.f32 %v1782, 0.6931472
  %v1784 = vlog2.pop %v1762
  %v1785 = vmul.f32 %v1784, 0.6931472
  %v1786 = vlog2.pop %v1763
  %v1787 = vmul.f32 %v1786, 0.6931472
  %v1788 = vlog2.pop %v1764
  %v1789 = vmul.f32 %v1788, 0.6931472
  %v1790 = vlog2.pop %v1765
  %v1791 = vmul.f32 %v1790, 0.6931472
  %v1792 = vlog2.pop %v1766
  %v1793 = vmul.f32 %v1792, 0.6931472
  %v1794 = vlog2.pop %v1767
  %v1795 = vmul.f32 %v1794, 0.6931472
  %v1796 = vlog2.pop %v1768
  %v1797 = vmul.f32 %v1796, 0.6931472
  %v1798 = vlog2.pop %v1769
  %v1799 = vmul.f32 %v1798, 0.6931472
  %v1800 = vlog2.pop %v1770
  %v1801 = vmul.f32 %v1800, 0.6931472
  %v1802 = vlog2.pop %v1771
  %v1803 = vmul.f32 %v1802, 0.6931472
  %v1804 = vadd.f32 %v1676, %v1773
  %v1805 = vadd.f32 %v1677, %v1775
  %v1806 = vadd.f32 %v1678, %v1777
  %v1807 = vadd.f32 %v1679, %v1779
  %v1808 = vadd.f32 %v1680, %v1781
  %v1809 = vadd.f32 %v1681, %v1783
  %v1810 = vadd.f32 %v1682, %v1785
  %v1811 = vadd.f32 %v1683, %v1787
  %v1812 = vadd.f32 %v1684, %v1789
  %v1813 = vadd.f32 %v1685, %v1791
  %v1814 = vadd.f32 %v1686, %v1793
  %v1815 = vadd.f32 %v1687, %v1795
  %v1816 = vadd.f32 %v1688, %v1797
  %v1817 = vadd.f32 %v1689, %v1799
  %v1818 = vadd.f32 %v1690, %v1801
  %v1819 = vadd.f32 %v1691, %v1803
  %v1820 = vmul.f32 %v1804, 0.1
  %v1821 = vmul.f32 %v1805, 0.1
  %v1822 = vmul.f32 %v1806, 0.1
  %v1823 = vmul.f32 %v1807, 0.1
  %v1824 = vmul.f32 %v1808, 0.1
  %v1825 = vmul.f32 %v1809, 0.1
  %v1826 = vmul.f32 %v1810, 0.1
  %v1827 = vmul.f32 %v1811, 0.1
  %v1828 = vmul.f32 %v1812, 0.1
  %v1829 = vmul.f32 %v1813, 0.1
  %v1830 = vmul.f32 %v1814, 0.1
  %v1831 = vmul.f32 %v1815, 0.1
  %v1832 = vmul.f32 %v1816, 0.1
  %v1833 = vmul.f32 %v1817, 0.1
  %v1834 = vmul.f32 %v1818, 0.1
  %v1835 = vmul.f32 %v1819, 0.1
  %v1836 = vadd.f32 %v1444, %v1659
  %v1837 = vmax.f32 %v1836, 0.0
  %v1838 = vand.u32 2147483647, %v1836
  %v1839 = vsub.f32 0.0, %v1838
  %v1840 = vmul.f32 %v1839, 1.442695
  %v1841 = vpow.pop %v1840
  %v1842 = vadd.f32 %v1841, 1.0
  %v1843 = vlog2.pop %v1842
  %v1844 = vmul.f32 %v1843, 0.6931472
  %v1845 = vadd.f32 %v1837, %v1844
  %v1846 = vmul.f32 %v1845, 0.1
  %vm1847 = vmand %vm499, %vm547
  %vm1848 = vmand %vm500, %vm548
  %vm1849 = vmand %vm501, %vm549
  %vm1850 = vmand %vm502, %vm550
  %vm1851 = vmand %vm503, %vm551
  %vm1852 = vmand %vm504, %vm552
  %vm1853 = vmand %vm505, %vm553
  %vm1854 = vmand %vm506, %vm554
  %vm1855 = vmand %vm507, %vm555
  %vm1856 = vmand %vm508, %vm556
  %vm1857 = vmand %vm509, %vm557
  %vm1858 = vmand %vm510, %vm558
  %vm1859 = vmand %vm511, %vm559
  %vm1860 = vmand %vm512, %vm560
  %vm1861 = vmand %vm513, %vm561
  %vm1862 = vmand %vm514, %vm562
  %vm1863 = vmand %vm584, %vm606
  %v1864 = vsel %vm1847, 1, 0
  %v1865 = vsel %vm1848, 1, 0
  %v1866 = vsel %vm1849, 1, 0
  %v1867 = vsel %vm1850, 1, 0
  %v1868 = vsel %vm1851, 1, 0
  %v1869 = vsel %vm1852, 1, 0
  %v1870 = vsel %vm1853, 1, 0
  %v1871 = vsel %vm1854, 1, 0
  %v1872 = vsel %vm1855, 1, 0
  %v1873 = vsel %vm1856, 1, 0
  %v1874 = vsel %vm1857, 1, 0
  %v1875 = vsel %vm1858, 1, 0
  %v1876 = vsel %vm1859, 1, 0
  %v1877 = vsel %vm1860, 1, 0
  %v1878 = vsel %vm1861, 1, 0
  %v1879 = vsel %vm1862, 1, 0
  %v1880 = vcvt.s32.f32 %v1864
  %v1881 = vcvt.s32.f32 %v1865
  %v1882 = vcvt.s32.f32 %v1866
  %v1883 = vcvt.s32.f32 %v1867
  %v1884 = vcvt.s32.f32 %v1868
  %v1885 = vcvt.s32.f32 %v1869
  %v1886 = vcvt.s32.f32 %v1870
  %v1887 = vcvt.s32.f32 %v1871
  %v1888 = vcvt.s32.f32 %v1872
  %v1889 = vcvt.s32.f32 %v1873
  %v1890 = vcvt.s32.f32 %v1874
  %v1891 = vcvt.s32.f32 %v1875
  %v1892 = vcvt.s32.f32 %v1876
  %v1893 = vcvt.s32.f32 %v1877
  %v1894 = vcvt.s32.f32 %v1878
  %v1895 = vcvt.s32.f32 %v1879
  %v1896 = vadd.f32 %v1880, %v1881
  %v1897 = vadd.f32 %v1896, %v1882
  %v1898 = vadd.f32 %v1897, %v1883
  %v1899 = vadd.f32 %v1898, %v1884
  %v1900 = vadd.f32 %v1899, %v1885
  %v1901 = vadd.f32 %v1900, %v1886
  %v1902 = vadd.f32 %v1901, %v1887
  %v1903 = vadd.f32 %v1902, %v1888
  %v1904 = vadd.f32 %v1903, %v1889
  %v1905 = vadd.f32 %v1904, %v1890
  %v1906 = vadd.f32 %v1905, %v1891
  %v1907 = vadd.f32 %v1906, %v1892
  %v1908 = vadd.f32 %v1907, %v1893
  %v1909 = vadd.f32 %v1908, %v1894
  %v1910 = vadd.f32 %v1909, %v1895
  %v1911 = vrot.slane %v1910, 4
  %v1912 = vadd.f32 %v1910, %v1911
  %v1913 = vrot.slane %v1912, 2
  %v1914 = vadd.f32 %v1912, %v1913
  %v1915 = vrot.slane %v1914, 1
  %v1916 = vadd.f32 %v1914, %v1915
  %v1917 = vmax.f32 %v1916, 1.0
  %v1918 = vsel %vm1863, 1, 0
  %v1919 = vcvt.s32.f32 %v1918
  %1920 = vadd.xlane.f32.xlu0 %v1919
  %v1921 = vpop.xlane.xlu0 %1920
  %v1922 = vmax.f32 %v1921, 1.0
  %v1923 = vsel %vm1847, %v1820, 0.0
  %v1924 = vsel %vm1848, %v1821, 0.0
  %v1925 = vsel %vm1849, %v1822, 0.0
  %v1926 = vsel %vm1850, %v1823, 0.0
  %v1927 = vsel %vm1851, %v1824, 0.0
  %v1928 = vsel %vm1852, %v1825, 0.0
  %v1929 = vsel %vm1853, %v1826, 0.0
  %v1930 = vsel %vm1854, %v1827, 0.0
  %v1931 = vsel %vm1855, %v1828, 0.0
  %v1932 = vsel %vm1856, %v1829, 0.0
  %v1933 = vsel %vm1857, %v1830, 0.0
  %v1934 = vsel %vm1858, %v1831, 0.0
  %v1935 = vsel %vm1859, %v1832, 0.0
  %v1936 = vsel %vm1860, %v1833, 0.0
  %v1937 = vsel %vm1861, %v1834, 0.0
  %v1938 = vsel %vm1862, %v1835, 0.0
  %v1939 = vadd.f32 %v1923, %v1924
  %v1940 = vadd.f32 %v1939, %v1925
  %v1941 = vadd.f32 %v1940, %v1926
  %v1942 = vadd.f32 %v1941, %v1927
  %v1943 = vadd.f32 %v1942, %v1928
  %v1944 = vadd.f32 %v1943, %v1929
  %v1945 = vadd.f32 %v1944, %v1930
  %v1946 = vadd.f32 %v1945, %v1931
  %v1947 = vadd.f32 %v1946, %v1932
  %v1948 = vadd.f32 %v1947, %v1933
  %v1949 = vadd.f32 %v1948, %v1934
  %v1950 = vadd.f32 %v1949, %v1935
  %v1951 = vadd.f32 %v1950, %v1936
  %v1952 = vadd.f32 %v1951, %v1937
  %v1953 = vadd.f32 %v1952, %v1938
  %v1954 = vrot.slane %v1953, 4
  %v1955 = vadd.f32 %v1953, %v1954
  %v1956 = vrot.slane %v1955, 2
  %v1957 = vadd.f32 %v1955, %v1956
  %v1958 = vrot.slane %v1957, 1
  %v1959 = vadd.f32 %v1957, %v1958
  %v1960 = vrcp.pop %v1917
  %v1961 = vmul.f32 %v1959, %v1960
  %v1962 = vsel %vm1863, %v1846, 0.0
  %1963 = vadd.xlane.f32.xlu0 %v1962
  %v1964 = vpop.xlane.xlu0 %1963
  %v1965 = vrcp.pop %v1922
  %v1966 = vmul.f32 %v1964, %v1965
  %v1967 = vadd.f32 %v1961, %v1966
  %v1968 = vmul.f32 %v1967, 0.5
  %v1969 = vlaneseq
  %v1970 = vshrl.u32 %v1969, 7
  %v1971 = vadd.s32 %v1970, 8
  %v1972 = vadd.s32 %v1970, 16
  %v1973 = vadd.s32 %v1970, 24
  %v1974 = vadd.s32 %v1970, 32
  %v1975 = vadd.s32 %v1970, 40
  %v1976 = vadd.s32 %v1970, 48
  %v1977 = vadd.s32 %v1970, 56
  %v1978 = vadd.s32 %v1970, 64
  %v1979 = vadd.s32 %v1970, 72
  %v1980 = vadd.s32 %v1970, 80
  %v1981 = vadd.s32 %v1970, 88
  %v1982 = vadd.s32 %v1970, 96
  %v1983 = vadd.s32 %v1970, 104
  %v1984 = vadd.s32 %v1970, 112
  %v1985 = vadd.s32 %v1970, 120
  %v1986 = vlaneseq
  %v1987 = vand.u32 %v1986, 127
  %vm1988 = vcmp.eq.s32.totalorder %v1970, %v1987
  %vm1989 = vcmp.eq.s32.totalorder %v1971, %v1987
  %vm1990 = vcmp.eq.s32.totalorder %v1972, %v1987
  %vm1991 = vcmp.eq.s32.totalorder %v1973, %v1987
  %vm1992 = vcmp.eq.s32.totalorder %v1974, %v1987
  %vm1993 = vcmp.eq.s32.totalorder %v1975, %v1987
  %vm1994 = vcmp.eq.s32.totalorder %v1976, %v1987
  %vm1995 = vcmp.eq.s32.totalorder %v1977, %v1987
  %vm1996 = vcmp.eq.s32.totalorder %v1978, %v1987
  %vm1997 = vcmp.eq.s32.totalorder %v1979, %v1987
  %vm1998 = vcmp.eq.s32.totalorder %v1980, %v1987
  %vm1999 = vcmp.eq.s32.totalorder %v1981, %v1987
  %vm2000 = vcmp.eq.s32.totalorder %v1982, %v1987
  %vm2001 = vcmp.eq.s32.totalorder %v1983, %v1987
  %vm2002 = vcmp.eq.s32.totalorder %v1984, %v1987
  %vm2003 = vcmp.eq.s32.totalorder %v1985, %v1987
  %v2004 = vsel %vm1988, %v1124, 0.0
  %v2005 = vsel %vm1989, %v1131, 0.0
  %v2006 = vsel %vm1990, %v1138, 0.0
  %v2007 = vsel %vm1991, %v1145, 0.0
  %v2008 = vsel %vm1992, %v1152, 0.0
  %v2009 = vsel %vm1993, %v1159, 0.0
  %v2010 = vsel %vm1994, %v1166, 0.0
  %v2011 = vsel %vm1995, %v1173, 0.0
  %v2012 = vsel %vm1996, %v1180, 0.0
  %v2013 = vsel %vm1997, %v1187, 0.0
  %v2014 = vsel %vm1998, %v1194, 0.0
  %v2015 = vsel %vm1999, %v1201, 0.0
  %v2016 = vsel %vm2000, %v1208, 0.0
  %v2017 = vsel %vm2001, %v1215, 0.0
  %v2018 = vsel %vm2002, %v1222, 0.0
  %v2019 = vsel %vm2003, %v1229, 0.0
  %2020 = vmax.xlane.f32.xlu0 %v2004
  %v2021 = vpop.xlane.xlu0 %2020
  %2022 = vmax.xlane.f32.xlu0 %v2005
  %v2023 = vpop.xlane.xlu0 %2022
  %2024 = vmax.xlane.f32.xlu0 %v2006
  %v2025 = vpop.xlane.xlu0 %2024
  %2026 = vmax.xlane.f32.xlu0 %v2007
  %v2027 = vpop.xlane.xlu0 %2026
  %2028 = vmax.xlane.f32.xlu0 %v2008
  %v2029 = vpop.xlane.xlu0 %2028
  %2030 = vmax.xlane.f32.xlu0 %v2009
  %v2031 = vpop.xlane.xlu0 %2030
  %2032 = vmax.xlane.f32.xlu0 %v2010
  %v2033 = vpop.xlane.xlu0 %2032
  %2034 = vmax.xlane.f32.xlu0 %v2011
  %v2035 = vpop.xlane.xlu0 %2034
  %2036 = vmax.xlane.f32.xlu0 %v2012
  %v2037 = vpop.xlane.xlu0 %2036
  %2038 = vmax.xlane.f32.xlu0 %v2013
  %v2039 = vpop.xlane.xlu0 %2038
  %2040 = vmax.xlane.f32.xlu0 %v2014
  %v2041 = vpop.xlane.xlu0 %2040
  %2042 = vmax.xlane.f32.xlu0 %v2015
  %v2043 = vpop.xlane.xlu0 %2042
  %2044 = vmax.xlane.f32.xlu0 %v2016
  %v2045 = vpop.xlane.xlu0 %2044
  %2046 = vmax.xlane.f32.xlu0 %v2017
  %v2047 = vpop.xlane.xlu0 %2046
  %2048 = vmax.xlane.f32.xlu0 %v2018
  %v2049 = vpop.xlane.xlu0 %2048
  %2050 = vmax.xlane.f32.xlu0 %v2019
  %v2051 = vpop.xlane.xlu0 %2050
  %v2052 = vsel %vm1988, 1e+30, %v1124
  %v2053 = vsel %vm1989, 1e+30, %v1131
  %v2054 = vsel %vm1990, 1e+30, %v1138
  %v2055 = vsel %vm1991, 1e+30, %v1145
  %v2056 = vsel %vm1992, 1e+30, %v1152
  %v2057 = vsel %vm1993, 1e+30, %v1159
  %v2058 = vsel %vm1994, 1e+30, %v1166
  %v2059 = vsel %vm1995, 1e+30, %v1173
  %v2060 = vsel %vm1996, 1e+30, %v1180
  %v2061 = vsel %vm1997, 1e+30, %v1187
  %v2062 = vsel %vm1998, 1e+30, %v1194
  %v2063 = vsel %vm1999, 1e+30, %v1201
  %v2064 = vsel %vm2000, 1e+30, %v1208
  %v2065 = vsel %vm2001, 1e+30, %v1215
  %v2066 = vsel %vm2002, 1e+30, %v1222
  %v2067 = vsel %vm2003, 1e+30, %v1229
  %2068 = vmin.xlane.f32.xlu0 %v2052
  %v2069 = vpop.xlane.xlu0 %2068
  %2070 = vmin.xlane.f32.xlu0 %v2053
  %v2071 = vpop.xlane.xlu0 %2070
  %2072 = vmin.xlane.f32.xlu0 %v2054
  %v2073 = vpop.xlane.xlu0 %2072
  %2074 = vmin.xlane.f32.xlu0 %v2055
  %v2075 = vpop.xlane.xlu0 %2074
  %2076 = vmin.xlane.f32.xlu0 %v2056
  %v2077 = vpop.xlane.xlu0 %2076
  %2078 = vmin.xlane.f32.xlu0 %v2057
  %v2079 = vpop.xlane.xlu0 %2078
  %2080 = vmin.xlane.f32.xlu0 %v2058
  %v2081 = vpop.xlane.xlu0 %2080
  %2082 = vmin.xlane.f32.xlu0 %v2059
  %v2083 = vpop.xlane.xlu0 %2082
  %2084 = vmin.xlane.f32.xlu0 %v2060
  %v2085 = vpop.xlane.xlu0 %2084
  %2086 = vmin.xlane.f32.xlu0 %v2061
  %v2087 = vpop.xlane.xlu0 %2086
  %2088 = vmin.xlane.f32.xlu0 %v2062
  %v2089 = vpop.xlane.xlu0 %2088
  %2090 = vmin.xlane.f32.xlu0 %v2063
  %v2091 = vpop.xlane.xlu0 %2090
  %2092 = vmin.xlane.f32.xlu0 %v2064
  %v2093 = vpop.xlane.xlu0 %2092
  %2094 = vmin.xlane.f32.xlu0 %v2065
  %v2095 = vpop.xlane.xlu0 %2094
  %2096 = vmin.xlane.f32.xlu0 %v2066
  %v2097 = vpop.xlane.xlu0 %2096
  %2098 = vmin.xlane.f32.xlu0 %v2067
  %v2099 = vpop.xlane.xlu0 %2098
  %v2100 = vsub.f32 %v2021, %v2069
  %v2101 = vsub.f32 %v2023, %v2071
  %v2102 = vsub.f32 %v2025, %v2073
  %v2103 = vsub.f32 %v2027, %v2075
  %v2104 = vsub.f32 %v2029, %v2077
  %v2105 = vsub.f32 %v2031, %v2079
  %v2106 = vsub.f32 %v2033, %v2081
  %v2107 = vsub.f32 %v2035, %v2083
  %v2108 = vsub.f32 %v2037, %v2085
  %v2109 = vsub.f32 %v2039, %v2087
  %v2110 = vsub.f32 %v2041, %v2089
  %v2111 = vsub.f32 %v2043, %v2091
  %v2112 = vsub.f32 %v2045, %v2093
  %v2113 = vsub.f32 %v2047, %v2095
  %v2114 = vsub.f32 %v2049, %v2097
  %v2115 = vsub.f32 %v2051, %v2099
  %v2116 = vld [vmem:[%s6] sm:$0xff]
  %v2117 = vld [vmem:[%s6 + $0x8] sm:$0xff]
  %v2118 = vld [vmem:[%s6 + $0x10] sm:$0xff]
  %v2119 = vld [vmem:[%s6 + $0x18] sm:$0xff]
  %v2120 = vld [vmem:[%s6 + $0x20] sm:$0xff]
  %v2121 = vld [vmem:[%s6 + $0x28] sm:$0xff]
  %v2122 = vld [vmem:[%s6 + $0x30] sm:$0xff]
  %v2123 = vld [vmem:[%s6 + $0x38] sm:$0xff]
  %v2124 = vld [vmem:[%s6 + $0x40] sm:$0xff]
  %v2125 = vld [vmem:[%s6 + $0x48] sm:$0xff]
  %v2126 = vld [vmem:[%s6 + $0x50] sm:$0xff]
  %v2127 = vld [vmem:[%s6 + $0x58] sm:$0xff]
  %v2128 = vld [vmem:[%s6 + $0x60] sm:$0xff]
  %v2129 = vld [vmem:[%s6 + $0x68] sm:$0xff]
  %v2130 = vld [vmem:[%s6 + $0x70] sm:$0xff]
  %v2131 = vld [vmem:[%s6 + $0x78] sm:$0xff]
  %v2132 = vmul.f32 %v2100, %v2116
  %v2133 = vmul.f32 %v2101, %v2117
  %v2134 = vmul.f32 %v2102, %v2118
  %v2135 = vmul.f32 %v2103, %v2119
  %v2136 = vmul.f32 %v2104, %v2120
  %v2137 = vmul.f32 %v2105, %v2121
  %v2138 = vmul.f32 %v2106, %v2122
  %v2139 = vmul.f32 %v2107, %v2123
  %v2140 = vmul.f32 %v2108, %v2124
  %v2141 = vmul.f32 %v2109, %v2125
  %v2142 = vmul.f32 %v2110, %v2126
  %v2143 = vmul.f32 %v2111, %v2127
  %v2144 = vmul.f32 %v2112, %v2128
  %v2145 = vmul.f32 %v2113, %v2129
  %v2146 = vmul.f32 %v2114, %v2130
  %v2147 = vmul.f32 %v2115, %v2131
  %vm2148 = vcmask 7168
  %v2149 = vsel %vm2148, %v2132, 0.0
  %v2150 = vsel %vm2148, %v2133, 0.0
  %v2151 = vadd.f32 %v2149, %v2150
  %v2152 = vsel %vm2148, %v2134, 0.0
  %v2153 = vadd.f32 %v2151, %v2152
  %v2154 = vsel %vm2148, %v2135, 0.0
  %v2155 = vadd.f32 %v2153, %v2154
  %v2156 = vsel %vm2148, %v2136, 0.0
  %v2157 = vadd.f32 %v2155, %v2156
  %v2158 = vsel %vm2148, %v2137, 0.0
  %v2159 = vadd.f32 %v2157, %v2158
  %v2160 = vsel %vm2148, %v2138, 0.0
  %v2161 = vadd.f32 %v2159, %v2160
  %v2162 = vsel %vm2148, %v2139, 0.0
  %v2163 = vadd.f32 %v2161, %v2162
  %v2164 = vsel %vm2148, %v2140, 0.0
  %v2165 = vadd.f32 %v2163, %v2164
  %v2166 = vsel %vm2148, %v2141, 0.0
  %v2167 = vadd.f32 %v2165, %v2166
  %v2168 = vsel %vm2148, %v2142, 0.0
  %v2169 = vadd.f32 %v2167, %v2168
  %v2170 = vsel %vm2148, %v2143, 0.0
  %v2171 = vadd.f32 %v2169, %v2170
  %v2172 = vsel %vm2148, %v2144, 0.0
  %v2173 = vadd.f32 %v2171, %v2172
  %v2174 = vsel %vm2148, %v2145, 0.0
  %v2175 = vadd.f32 %v2173, %v2174
  %v2176 = vsel %vm2148, %v2146, 0.0
  %v2177 = vadd.f32 %v2175, %v2176
  %v2178 = vsel %vm2148, %v2147, 0.0
  %v2179 = vadd.f32 %v2177, %v2178
  %v2180 = vrot.slane %v2179, 4
  %v2181 = vadd.f32 %v2179, %v2180
  %v2182 = vrot.slane %v2181, 2
  %v2183 = vadd.f32 %v2181, %v2182
  %v2184 = vrot.slane %v2183, 1
  %v2185 = vadd.f32 %v2183, %v2184
  %v2186 = vmul.f32 %v2185, 0.0078125
  %v2187 = vadd.f32 %v1968, %v2186
  %vm2188 = vcmp.eq.s32.totalorder %v1987, 0
  %vm2189 = vcmp.eq.s32.totalorder %v1987, 1
  %vm2190 = vcmp.eq.s32.totalorder %v1987, 2
  %2192 = vset.pattern.permute.xlu0 0
  %2193 = vperm.xlu0 %2192, %v2186
  %v2194 = vpop.permute.xlu0 %2193
  %2197 = vset.pattern.permute.xlu0 0
  %2198 = vperm.xlu0 %2197, %v2187
  %v2199 = vpop.permute.xlu0 %2198
  %v2201 = vsel %vm2190, %v2194, %v2199
  %v2202 = vsel %vm2189, %v1968, %v2201
  %v2203 = vsel %vm2188, %v1117, %v2202
  %vm2204 = vcmask 24576
  %2205 = vst.msk [vmem:[%s7] sm:$0x1] %vm2204, %v2203
  // Predicated region
  $region30: #{d3feat_loss.1} parent=0 // pred_check
    _
  $region31: #{d3feat_loss.1} parent=0 // pred_check_branch
    %2207 = sbr.rel (0) target = $region33
  $region32: #{d3feat_loss.1} parent=0 // pred_region
    _
  $region33: #{d3feat_loss.1} parent=0 // pred_fallthru
    _
  // Predicated region
  $region34: #{d3feat_loss.1} parent=0 // pred_check
    _
  $region35: #{d3feat_loss.1} parent=0 // pred_check_branch
    %2209 = sbr.rel (0) target = $region37
  $region36: #{d3feat_loss.1} parent=0 // pred_region
    _
  $region37: #{d3feat_loss.1} parent=0 // pred_fallthru
    _

</llo_original>
